<compile_context>
chip_gen: v7x
topology: tpu7x:2x2x1
jax: 0.10.0
libtpu: 0.0.40
codegen_flags: <defaults>
</compile_context>

<pallas_src>
import functools

import jax
import jax.numpy as jnp
from jax.experimental import pallas as pl
from jax.experimental.pallas import tpu as pltpu

L = 768          # instance feature dim
D = 192          # attention hidden dim
K = 1            # attention heads
FUSED = 512      # fused projection width: [Wv | Wu | Wc | zero-pad] = 4x128 lanes


def gated_attention_kernel(n_ref,                                    # scalar prefetch: actual N
                           x_ref, wf_ref, bf_ref, ww_ref, bc_ref,    # inputs
                           yprob_ref, a_ref,                         # outputs
                           xc_ref):                                  # scratch
    i = pl.program_id(0)
    tile_n = x_ref.shape[0]

    # --- one fused MXU pass over this tile of instances -----------------------
    # Cast the x tile to the packed-weight dtype (bf16 by default) in-register;
    # the accumulate stays f32.
    xv = x_ref[...].astype(wf_ref.dtype)
    z = jnp.dot(xv, wf_ref[...],
                preferred_element_type=jnp.float32) + bf_ref[...]     # (t, 512) f32

    a_v = jnp.tanh(z[:, :D])                         # attention_V    (t, D)
    a_u = jax.nn.sigmoid(z[:, D:2 * D])              # attention_U    (t, D)
    gated = a_v * a_u                                # (t, D)

    # attention scores: VPU multiply + lane reduce (1-wide MXU matmul avoided);
    # bw is dropped because a constant shift cancels exactly under softmax.
    scores = jnp.sum(gated * ww_ref[...], axis=-1, keepdims=True)     # (t, 1)

    # xc = x @ Wc is exactly the single fused output column 2*D (the remaining
    # columns of that 128-lane group are zero-padded), so a slice suffices.
    xc = z[:, 2 * D:2 * D + 1]                                        # (t, 1)

    # Mask padded instances (rows >= N): no contribution to softmax or y.
    row = i * tile_n + jax.lax.broadcasted_iota(jnp.int32, (tile_n, 1), 0)
    valid = row < n_ref[0]
    scores = jnp.where(valid, scores, jnp.float32(-1e30))
    xc = jnp.where(valid, xc, jnp.float32(0.0))

    # Stage this tile lane-dense as one row of the grid-resident buffers.
    # (micro-opt left on the table: concat to (t,2) and transpose once)
    a_ref[pl.ds(i, 1), :] = jnp.transpose(scores)                     # (1, t)
    xc_ref[pl.ds(i, 1), :] = jnp.transpose(xc)                        # (1, t)

    # --- epilogue: global softmax over all instances + classifier head --------
    @pl.when(i == pl.num_programs(0) - 1)
    def _():
        s = a_ref[...]                                 # (grid_n, t) raw scores
        m = jnp.max(jnp.max(s, axis=1, keepdims=True), axis=0, keepdims=True)
        e = jnp.exp(s - m)                             # padded entries -> 0
        denom = jnp.sum(jnp.sum(e, axis=1, keepdims=True), axis=0, keepdims=True)
        attn = e * pl.reciprocal(denom, approx=False)
        a_ref[...] = attn
        w = attn * xc_ref[...]
        y = jnp.sum(jnp.sum(w, axis=1, keepdims=True), axis=0, keepdims=True)
        yprob_ref[...] = y + bc_ref[0, 0]


def _round_up(v, m):
    return ((v + m - 1) // m) * m


def pack_gated_attention_params(params, use_bf16_matmul=True):
    """Fuse [Wv | Wu | Wc | 0] into one lane-aligned weight.  Called ONCE
    outside the jitted forward so the packed weights are cached in HBM and not
    re-materialized per call."""
    wv, bv, wu, bu, ww, bw, wc, bc = params
    del bw  # constant shift of the scores: softmax-invariant, dead work.

    wdt = jnp.bfloat16 if use_bf16_matmul else jnp.float32
    wf = jnp.zeros((L, FUSED), jnp.float32)
    wf = wf.at[:, :D].set(wv)
    wf = wf.at[:, D:2 * D].set(wu)
    wf = wf.at[:, 2 * D:2 * D + 1].set(wc.reshape(L, 1))
    wf = wf.astype(wdt)                                   # bf16 MXU operands
    bf = jnp.zeros((1, FUSED), jnp.float32)                # bias stays f32
    bf = bf.at[:, :D].set(bv.reshape(1, D))
    bf = bf.at[:, D:2 * D].set(bu.reshape(1, D))
    ww_row = ww.reshape(1, D).astype(jnp.float32)          # attention weights row
    bc_s = bc.reshape(1, 1).astype(jnp.float32)            # classifier bias -> SMEM
    return wf, bf, ww_row, bc_s


@functools.partial(jax.jit, static_argnames=("tile_n",))
def gated_attention_forward(x, packed, tile_n=1024):
    """x: (1, N, L) as in the PyTorch module; packed = pack_gated_attention_params(...).
    Returns (Y_prob (1,1), A (1,N))."""
    wf, bf, ww_row, bc_s = packed
    n = x.shape[-2]
    xs = x.reshape(n, L)                  # keep caller dtype; cast per-tile in-kernel

    # Tile the instance axis (sublane multiple of 8); pad N to a tile multiple.
    tile = min(tile_n, _round_up(n, 8))
    n_pad = _round_up(n, tile)
    grid_n = n_pad // tile
    if n_pad != n:
        xs = jnp.pad(xs, ((0, n_pad - n), (0, 0)))

    grid_spec = pltpu.PrefetchScalarGridSpec(
        num_scalar_prefetch=1,
        grid=(grid_n,),
        in_specs=[
            pl.BlockSpec((tile, L), lambda i, n_sc: (i, 0)),       # x tiles (streamed)
            pl.BlockSpec((L, FUSED), lambda i, n_sc: (0, 0)),      # fused W (resident)
            pl.BlockSpec((1, FUSED), lambda i, n_sc: (0, 0)),      # fused bias
            pl.BlockSpec((1, D), lambda i, n_sc: (0, 0)),          # Ww row
            pl.BlockSpec(memory_space=pltpu.SMEM),                 # bc scalar
        ],
        out_specs=(
            pl.BlockSpec((1, 1), lambda i, n_sc: (0, 0)),            # Y_prob
            pl.BlockSpec((grid_n, tile), lambda i, n_sc: (0, 0)),    # A (resident)
        ),
        scratch_shapes=[pltpu.VMEM((grid_n, tile), jnp.float32)],    # per-instance xc
    )

    y_prob, attn_tiles = pl.pallas_call(
        gated_attention_kernel,
        out_shape=(
            jax.ShapeDtypeStruct((1, 1), jnp.float32),
            jax.ShapeDtypeStruct((grid_n, tile), jnp.float32),
        ),
        grid_spec=grid_spec,
        compiler_params=pltpu.CompilerParams(
            dimension_semantics=("arbitrary",)),   # outputs are grid-resident
    )(jnp.array([n], jnp.int32), xs, wf, bf, ww_row, bc_s)

    return y_prob, attn_tiles.reshape(1, n_pad)[:, :n]


def init_params(key):
    """Deterministic synthetic parameters (PyTorch Linear-style uniform init),
    stored pre-transposed as (in_features, out_features)."""
    ks = jax.random.split(key, 8)

    def lin(kw, kb, fan_in, fan_out):
        bound = 1.0 / jnp.sqrt(fan_in)
        w = jax.random.uniform(kw, (fan_in, fan_out), jnp.float32, -bound, bound)
        b = jax.random.uniform(kb, (1, fan_out), jnp.float32, -bound, bound)
        return w, b

    wv, bv = lin(ks[0], ks[1], L, D)      # attention_V
    wu, bu = lin(ks[2], ks[3], L, D)      # attention_U
    ww, bw = lin(ks[4], ks[5], D, K)      # attention_weights
    wc, bc = lin(ks[6], ks[7], L * K, 1)  # classifier
    return wv, bv, wu, bu, ww, bw, wc, bc


def reference_forward(x, params):
    """Pure-JAX reference of the PyTorch forward (dropout = identity)."""
    xs = x.reshape(x.shape[-2], x.shape[-1]).astype(jnp.float32)
    wv, bv, wu, bu, ww, bw, wc, bc = params
    a_v = jnp.tanh(xs @ wv + bv)
    a_u = jax.nn.sigmoid(xs @ wu + bu)
    scores = (a_v * a_u) @ ww + bw                      # (N, 1)
    a = jax.nn.softmax(scores.T, axis=1)                # (1, N)
    m = a @ xs                                          # (1, L)
    y = m @ wc + bc                                     # (1, 1)
    return y, a


if __name__ == "__main__":
    key = jax.random.PRNGKey(0)
    k_param, k_x1, k_x2 = jax.random.split(key, 3)
    params = init_params(k_param)

    packed_bf16 = pack_gated_attention_params(params, use_bf16_matmul=True)   # default path
    packed_f32 = pack_gated_attention_params(params, use_bf16_matmul=False)   # exactness check

    # (1) Small bag, f32 MXU path: tight check against the reference.
    x_small = jax.random.normal(k_x1, (1, 8, L), dtype=jnp.float32)
    y_s, a_s = gated_attention_forward(x_small, packed_f32)
    jax.block_until_ready((y_s, a_s))
    y_e, a_e = reference_forward(x_small, params)
    assert jnp.allclose(y_s, y_e, atol=1e-4, rtol=1e-3), (y_s, y_e)
    assert jnp.allclose(a_s, a_e, atol=1e-5, rtol=1e-3), (a_s, a_e)

    # (2) Larger bag, default bf16 MXU path, single tile (looser tolerances).
    x_big = jax.random.normal(k_x2, (1, 1000, L), dtype=jnp.float32)
    y_b, a_b = gated_attention_forward(x_big, packed_bf16)
    jax.block_until_ready((y_b, a_b))
    y_eb, a_eb = reference_forward(x_big, params)
    assert jnp.allclose(y_b, y_eb, atol=1e-2, rtol=2e-2), (y_b, y_eb)
    assert jnp.allclose(a_b, a_eb, atol=2e-3, rtol=2e-2), (a_b, a_eb)

    # (3) Same bag forced onto 4 tiles of 256 (+24 padded rows): exercises the
    #     multi-tile grid, padded-row masking, and the last-tile epilogue.
    y_t, a_t = gated_attention_forward(x_big, packed_bf16, tile_n=256)
    jax.block_until_ready((y_t, a_t))
    assert jnp.allclose(y_t, y_eb, atol=1e-2, rtol=2e-2), (y_t, y_eb)
    assert jnp.allclose(a_t, a_eb, atol=2e-3, rtol=2e-2), (a_t, a_eb)

    print("KERNEL_OK")
</pallas_src>

<mosaic_0001>
module attributes {stable_mosaic.version = 11 : i64} {
  func.func @gated_attention_kernel(%arg0: i32, %arg1: memref<1xi32, #tpu.memory_space<smem>>, %arg2: memref<8x768xf32, #tpu.memory_space<vmem>>, %arg3: memref<768x512xf32, #tpu.memory_space<vmem>>, %arg4: memref<1x512xf32, #tpu.memory_space<vmem>>, %arg5: memref<1x192xf32, #tpu.memory_space<vmem>>, %arg6: memref<1x1xf32, #tpu.memory_space<smem>>, %arg7: memref<1x1xf32, #tpu.memory_space<vmem>>, %arg8: memref<1x8xf32, #tpu.memory_space<vmem>>, %arg9: memref<1x8xf32, #tpu.memory_space<vmem>>) attributes {dimension_semantics = [#tpu.dimension_semantics<arbitrary>], iteration_bounds = array<i64: 1>, scalar_prefetch = 1 : i64, scratch_operands = 1 : i64, tpu.core_type = #tpu.core_type<tc>, window_params = [{transform_indices = @transform_0, window_bounds = array<i64: 8, 768>}, {pipeline_mode = #tpu.pipeline_mode<synchronous>, transform_indices = @transform_1, window_bounds = array<i64: 768, 512>}, {pipeline_mode = #tpu.pipeline_mode<synchronous>, transform_indices = @transform_2, window_bounds = array<i64: 1, 512>}, {pipeline_mode = #tpu.pipeline_mode<synchronous>, transform_indices = @transform_3, window_bounds = array<i64: 1, 192>}, {transform_indices = @transform_4, window_bounds = array<i64: 1, 1>}, {pipeline_mode = #tpu.pipeline_mode<synchronous>, transform_indices = @transform_5, window_bounds = array<i64: 1, 1>}, {pipeline_mode = #tpu.pipeline_mode<synchronous>, transform_indices = @transform_6, window_bounds = array<i64: 1, 8>}]} {
    %c0 = arith.constant 0 : index
    %c0_0 = arith.constant 0 : index
    %0 = vector.load %arg2[%c0, %c0_0] : memref<8x768xf32, #tpu.memory_space<vmem>>, vector<8x768xf32>
    %c0_1 = arith.constant 0 : index
    %c0_2 = arith.constant 0 : index
    %1 = vector.load %arg3[%c0_1, %c0_2] : memref<768x512xf32, #tpu.memory_space<vmem>>, vector<768x512xf32>
    %cst = arith.constant dense<0.000000e+00> : vector<8x512xf32>
    %2 = tpu.matmul %0, %1, %cst {dimension_numbers = #tpu.dot_dimension_numbers<[1], [0], [0], [1], [0, 0, 1, 1], [], []>} : vector<8x768xf32>, vector<768x512xf32>, vector<8x512xf32> -> vector<8x512xf32>
    %c0_3 = arith.constant 0 : index
    %c0_4 = arith.constant 0 : index
    %3 = vector.load %arg4[%c0_3, %c0_4] : memref<1x512xf32, #tpu.memory_space<vmem>>, vector<1x512xf32>
    %4 = vector.broadcast %3 : vector<1x512xf32> to vector<8x512xf32>
    %5 = arith.addf %2, %4 : vector<8x512xf32>
    %6 = vector.extract_strided_slice %5 {offsets = [0, 0], sizes = [8, 192], strides = [1, 1]} : vector<8x512xf32> to vector<8x192xf32>
    %7 = math.tanh %6 : vector<8x192xf32>
    %8 = vector.extract_strided_slice %5 {offsets = [0, 192], sizes = [8, 192], strides = [1, 1]} : vector<8x512xf32> to vector<8x192xf32>
    %9 = arith.negf %8 : vector<8x192xf32>
    %10 = math.exp %9 : vector<8x192xf32>
    %cst_5 = arith.constant 1.000000e+00 : f32
    %11 = vector.broadcast %cst_5 : f32 to vector<8x192xf32>
    %12 = arith.addf %11, %10 : vector<8x192xf32>
    %13 = arith.divf %11, %12 : vector<8x192xf32>
    %14 = arith.mulf %7, %13 : vector<8x192xf32>
    %c0_6 = arith.constant 0 : index
    %c0_7 = arith.constant 0 : index
    %15 = vector.load %arg5[%c0_6, %c0_7] : memref<1x192xf32, #tpu.memory_space<vmem>>, vector<1x192xf32>
    %16 = vector.broadcast %15 : vector<1x192xf32> to vector<8x192xf32>
    %17 = arith.mulf %14, %16 : vector<8x192xf32>
    %cst_8 = arith.constant dense<0.000000e+00> : vector<8xf32>
    %18 = vector.multi_reduction <add>, %17, %cst_8 [1] : vector<8x192xf32> to vector<8xf32>
    %19 = vector.shape_cast %18 : vector<8xf32> to vector<8x1xf32>
    %20 = vector.extract_strided_slice %5 {offsets = [0, 384], sizes = [8, 1], strides = [1, 1]} : vector<8x512xf32> to vector<8x1xf32>
    %c8_i32 = arith.constant 8 : i32
    %21 = arith.muli %arg0, %c8_i32 : i32
    %22 = tpu.iota {dimensions = array<i32: 0>} : vector<8x1xi32>
    %23 = vector.broadcast %21 : i32 to vector<8x1xi32>
    %24 = arith.addi %23, %22 : vector<8x1xi32>
    %c0_9 = arith.constant 0 : index
    %25 = memref.load %arg1[%c0_9] : memref<1xi32, #tpu.memory_space<smem>>
    %26 = vector.broadcast %25 : i32 to vector<8x1xi32>
    %27 = arith.cmpi slt, %24, %26 : vector<8x1xi32>
    %cst_10 = arith.constant -1.000000e+30 : f32
    %28 = vector.broadcast %cst_10 : f32 to vector<8x1xf32>
    %29 = arith.select %27, %19, %28 : vector<8x1xi1>, vector<8x1xf32>
    %cst_11 = arith.constant 0.000000e+00 : f32
    %30 = vector.broadcast %cst_11 : f32 to vector<8x1xf32>
    %31 = arith.select %27, %20, %30 : vector<8x1xi1>, vector<8x1xf32>
    %32 = tpu.transpose %29, [1, 0] : vector<8x1xf32> -> vector<1x8xf32>
    %33 = arith.index_cast %arg0 : i32 to index
    %c0_12 = arith.constant 0 : index
    %34 = vector.load %arg8[%33, %c0_12] : memref<1x8xf32, #tpu.memory_space<vmem>>, vector<1x8xf32>
    tpu.vector_store %arg8[%33, %c0_12], %32 {strides = array<i32>} : memref<1x8xf32, #tpu.memory_space<vmem>>, vector<1x8xf32>,
    %35 = tpu.transpose %31, [1, 0] : vector<8x1xf32> -> vector<1x8xf32>
    %36 = arith.index_cast %arg0 : i32 to index
    %c0_13 = arith.constant 0 : index
    %37 = vector.load %arg9[%36, %c0_13] : memref<1x8xf32, #tpu.memory_space<vmem>>, vector<1x8xf32>
    tpu.vector_store %arg9[%36, %c0_13], %35 {strides = array<i32>} : memref<1x8xf32, #tpu.memory_space<vmem>>, vector<1x8xf32>,
    %c0_i32 = arith.constant 0 : i32
    %38 = arith.cmpi eq, %arg0, %c0_i32 : i32
    %39 = arith.extui %38 : i1 to i32
    %c0_i32_14 = arith.constant 0 : i32
    %40 = arith.cmpi ne, %39, %c0_i32_14 : i32
    scf.if %40 {
      %c0_15 = arith.constant 0 : index
      %c0_16 = arith.constant 0 : index
      %41 = vector.load %arg8[%c0_15, %c0_16] : memref<1x8xf32, #tpu.memory_space<vmem>>, vector<1x8xf32>
      %cst_17 = arith.constant dense<0xFF800000> : vector<1xf32>
      %42 = vector.multi_reduction <maximumf>, %41, %cst_17 [1] : vector<1x8xf32> to vector<1xf32>
      %43 = vector.shape_cast %42 : vector<1xf32> to vector<1x1xf32>
      %cst_18 = arith.constant dense<0xFF800000> : vector<1xf32>
      %44 = vector.multi_reduction <maximumf>, %43, %cst_18 [0] : vector<1x1xf32> to vector<1xf32>
      %45 = vector.shape_cast %44 : vector<1xf32> to vector<1x1xf32>
      %46 = vector.broadcast %45 : vector<1x1xf32> to vector<1x8xf32>
      %47 = arith.subf %41, %46 : vector<1x8xf32>
      %48 = math.exp %47 : vector<1x8xf32>
      %cst_19 = arith.constant dense<0.000000e+00> : vector<1xf32>
      %49 = vector.multi_reduction <add>, %48, %cst_19 [1] : vector<1x8xf32> to vector<1xf32>
      %50 = vector.shape_cast %49 : vector<1xf32> to vector<1x1xf32>
      %cst_20 = arith.constant dense<0.000000e+00> : vector<1xf32>
      %51 = vector.multi_reduction <add>, %50, %cst_20 [0] : vector<1x1xf32> to vector<1xf32>
      %52 = vector.shape_cast %51 : vector<1xf32> to vector<1x1xf32>
      %53 = tpu.reciprocal %52 : vector<1x1xf32> -> vector<1x1xf32>
      %54 = vector.broadcast %53 : vector<1x1xf32> to vector<1x8xf32>
      %55 = arith.mulf %48, %54 : vector<1x8xf32>
      %c0_21 = arith.constant 0 : index
      %c0_22 = arith.constant 0 : index
      %56 = vector.load %arg8[%c0_21, %c0_22] : memref<1x8xf32, #tpu.memory_space<vmem>>, vector<1x8xf32>
      tpu.vector_store %arg8[%c0_21, %c0_22], %55 {strides = array<i32>} : memref<1x8xf32, #tpu.memory_space<vmem>>, vector<1x8xf32>,
      %c0_23 = arith.constant 0 : index
      %c0_24 = arith.constant 0 : index
      %57 = vector.load %arg9[%c0_23, %c0_24] : memref<1x8xf32, #tpu.memory_space<vmem>>, vector<1x8xf32>
      %58 = arith.mulf %55, %57 : vector<1x8xf32>
      %cst_25 = arith.constant dense<0.000000e+00> : vector<1xf32>
      %59 = vector.multi_reduction <add>, %58, %cst_25 [1] : vector<1x8xf32> to vector<1xf32>
      %60 = vector.shape_cast %59 : vector<1xf32> to vector<1x1xf32>
      %cst_26 = arith.constant dense<0.000000e+00> : vector<1xf32>
      %61 = vector.multi_reduction <add>, %60, %cst_26 [0] : vector<1x1xf32> to vector<1xf32>
      %62 = vector.shape_cast %61 : vector<1xf32> to vector<1x1xf32>
      %c0_27 = arith.constant 0 : index
      %c0_28 = arith.constant 0 : index
      %63 = memref.load %arg6[%c0_27, %c0_28] : memref<1x1xf32, #tpu.memory_space<smem>>
      %64 = vector.broadcast %63 : f32 to vector<1x1xf32>
      %65 = arith.addf %62, %64 : vector<1x1xf32>
      %c0_29 = arith.constant 0 : index
      %c0_30 = arith.constant 0 : index
      %66 = vector.load %arg7[%c0_29, %c0_30] : memref<1x1xf32, #tpu.memory_space<vmem>>, vector<1x1xf32>
      tpu.vector_store %arg7[%c0_29, %c0_30], %65 {strides = array<i32>} : memref<1x1xf32, #tpu.memory_space<vmem>>, vector<1x1xf32>,
    } else {
    }
    return
  }
  func.func @transform_0(%arg0: i32, %arg1: memref<1xi32, #tpu.memory_space<smem>>) -> (i32, i32) {
    %c0_i32 = arith.constant 0 : i32
    %c0_i32_0 = arith.constant 0 : i32
    return %arg0, %c0_i32 : i32, i32
  }
  func.func @transform_1(%arg0: i32, %arg1: memref<1xi32, #tpu.memory_space<smem>>) -> (i32, i32) {
    %c0_i32 = arith.constant 0 : i32
    %c0_i32_0 = arith.constant 0 : i32
    %c0_i32_1 = arith.constant 0 : i32
    return %c0_i32, %c0_i32_0 : i32, i32
  }
  func.func @transform_2(%arg0: i32, %arg1: memref<1xi32, #tpu.memory_space<smem>>) -> (i32, i32) {
    %c0_i32 = arith.constant 0 : i32
    %c0_i32_0 = arith.constant 0 : i32
    %c0_i32_1 = arith.constant 0 : i32
    return %c0_i32, %c0_i32_0 : i32, i32
  }
  func.func @transform_3(%arg0: i32, %arg1: memref<1xi32, #tpu.memory_space<smem>>) -> (i32, i32) {
    %c0_i32 = arith.constant 0 : i32
    %c0_i32_0 = arith.constant 0 : i32
    %c0_i32_1 = arith.constant 0 : i32
    return %c0_i32, %c0_i32_0 : i32, i32
  }
  func.func @transform_4(%arg0: i32, %arg1: memref<1xi32, #tpu.memory_space<smem>>) -> (i32, i32) {
    %c0_i32 = arith.constant 0 : i32
    %c0_i32_0 = arith.constant 0 : i32
    %c0_i32_1 = arith.constant 0 : i32
    return %c0_i32, %c0_i32_0 : i32, i32
  }
  func.func @transform_5(%arg0: i32, %arg1: memref<1xi32, #tpu.memory_space<smem>>) -> (i32, i32) {
    %c0_i32 = arith.constant 0 : i32
    %c0_i32_0 = arith.constant 0 : i32
    %c0_i32_1 = arith.constant 0 : i32
    return %c0_i32, %c0_i32_0 : i32, i32
  }
  func.func @transform_6(%arg0: i32, %arg1: memref<1xi32, #tpu.memory_space<smem>>) -> (i32, i32) {
    %c0_i32 = arith.constant 0 : i32
    %c0_i32_0 = arith.constant 0 : i32
    %c0_i32_1 = arith.constant 0 : i32
    return %c0_i32, %c0_i32_0 : i32, i32
  }
}

</mosaic_0001>

<llo_original>
// kernel: gated_attention_forward.1
$region0: #{gated_attention_forward.1}
  #allocation0 [shape = 'u32[]', space=smem, size = 0x4, offset = 0x4, fixed_abs, tag = 'smem constant byte address 0x4 - core index']
  #allocation1 [shape = 'u32[144,128]{1,0:T(1,128)}', space=vmem, size = 0x12000, scoped, tag = 'internal scratch']
  #allocation2 [shape = 'f32[1,8]{1,0:T(1,128)}', space=vmem, size = 0x200, scoped, tag = 'scratch operand']
  #allocation3 [shape = 's32[1]{0}', space=sflag, size = 0x4, scoped, tag = 'scoped memory for gated_attention_forward.1']
  #allocation4 [shape = 's32[1]{0:T(128)S(6)}', space=smem, size = 0x200, scoped, tag = 'prefetched SMEM operand 0']
  #allocation5 [shape = 'f32[1,1]{1,0:T(1,128)S(6)}', space=smem, size = 0x200, scoped, tag = 'scoped memory for gated_attention_forward.1']
  %s0 = inlined_call_operand.<no memory space> [shape: s32[1], index: 0, kind: input, shape index: {}]
  %s1 = inlined_call_operand.hbm [shape: f32[8,768], index: 1, kind: input, shape index: {}]
  %s2 = inlined_call_operand.hbm [shape: f32[768,512], index: 2, kind: input, shape index: {}]
  %s3 = inlined_call_operand.hbm [shape: f32[1,512], index: 3, kind: input, shape index: {}]
  %s4 = inlined_call_operand.hbm [shape: f32[1,192], index: 4, kind: input, shape index: {}]
  %s5 = inlined_call_operand.<no memory space> [shape: f32[1,1], index: 5, kind: input, shape index: {}]
  %s6 = inlined_call_operand.hbm [shape: f32[1,1], index: 6, kind: output, shape index: {0}]
  %s7 = inlined_call_operand.hbm [shape: f32[1,8], index: 7, kind: output, shape index: {1}]
  %8 = xla_tuple %s6, %s7
  %s9 = sld [smem:[#allocation0]]
  $region58: #{gated_attention_forward.1} parent=0
    _
  %s11 = ssub.s32 1, %s9
  %s12 = scalar_select 0, %s11, %s9
  %13 = sst [smem:[#allocation4]] %s0
  %14 = sst [smem:[#allocation5]] %s5
  $region1: #{gated_attention_forward.1} parent=0
    #allocation6 [shape = 'u8[24576]{0}', space=vmem, size = 0x6000, scoped, tag = 'input window, operand 1, single buffered']
    #allocation7 [shape = 's32[1]{0}', space=sflag, size = 0x4, scoped, tag = 'scoped memory for gated_attention_forward.1']
    #allocation8 [shape = 's32[1]{0}', space=sflag, size = 0x4, scoped, tag = 'scoped memory for gated_attention_forward.1']
    #allocation9 [shape = 'u8[1572864]{0}', space=vmem, size = 0x180000, scoped, tag = 'input window, operand 2, single buffered']
    #allocation10 [shape = 's32[1]{0}', space=sflag, size = 0x4, scoped, tag = 'scoped memory for gated_attention_forward.1']
    #allocation11 [shape = 'u8[2048]{0}', space=vmem, size = 0x800, scoped, tag = 'input window, operand 3, single buffered']
    #allocation12 [shape = 'u8[1024]{0}', space=vmem, size = 0x400, scoped, tag = 'input window, operand 4, single buffered']
    #allocation13 [shape = 's32[1]{0}', space=sflag, size = 0x4, scoped, tag = 'scoped memory for gated_attention_forward.1']
    #allocation14 [shape = 'u8[512]{0}', space=vmem, size = 0x400, scoped, tag = 'output window, operand 0, single buffered']
    #allocation15 [shape = 'u8[512]{0}', space=vmem, size = 0x400, scoped, tag = 'output window, operand 1, single buffered']
    #allocation16 [shape = 's32[1]{0}', space=sflag, size = 0x4, scoped, tag = 'scoped memory for gated_attention_forward.1']
    %15 = vsyncpa [#allocation7], 0
    %16 = vsyncpa [#allocation10], 0
    %17 = vsyncpa [#allocation13], 0
    %18 = vsyncpa [#allocation8], 0
    %19 = vsyncpa [#allocation16], 0
    // Predicated region
    $region2: #{gated_attention_forward.1} parent=1 // pred_check
      _
    $region3: #{gated_attention_forward.1} parent=1 // pred_check_branch
      %21 = sbr.rel (0) target = $region5
    $region4: #{gated_attention_forward.1} parent=1 // pred_region
      %s23 = ssub.s32 768, 768
      %24 = vsyncadd [#allocation7], %s23
      %s26 = sshll.u32 [#allocation6], 4
      %s27 = int_to_ptr.vmem [resolvable:$true] %s26
      %29 = dma.hbm_to_vmem [thread:$0]  %s1, 768, %s27, [#allocation7]
    $region5: #{gated_attention_forward.1} parent=1 // pred_fallthru
      _
    // Predicated region
    $region6: #{gated_attention_forward.1} parent=1 // pred_check
      _
    $region7: #{gated_attention_forward.1} parent=1 // pred_check_branch
      %31 = sbr.rel (0) target = $region9
    $region8: #{gated_attention_forward.1} parent=1 // pred_region
      %s33 = ssub.s32 49152, 49152
      %34 = vsyncadd [#allocation10], %s33
      %s35 = sshll.u32 [#allocation9], 4
      %s36 = int_to_ptr.vmem [resolvable:$true] %s35
      %41 = dma.hbm_to_vmem [thread:$0]  %s2, 49152, %s36, [#allocation10], 512, 512, 32
    $region9: #{gated_attention_forward.1} parent=1 // pred_fallthru
      _
    // Predicated region
    $region10: #{gated_attention_forward.1} parent=1 // pred_check
      _
    $region11: #{gated_attention_forward.1} parent=1 // pred_check_branch
      %43 = sbr.rel (0) target = $region13
    $region12: #{gated_attention_forward.1} parent=1 // pred_region
      %s45 = ssub.s32 64, 64
      %46 = vsyncadd [#allocation10], %s45
      %s48 = sshll.u32 [#allocation11], 4
      %s49 = int_to_ptr.vmem [resolvable:$true] %s48
      %51 = dma.hbm_to_vmem [thread:$0]  %s3, 64, %s49, [#allocation10]
    $region13: #{gated_attention_forward.1} parent=1 // pred_fallthru
      _
    // Predicated region
    $region14: #{gated_attention_forward.1} parent=1 // pred_check
      _
    $region15: #{gated_attention_forward.1} parent=1 // pred_check_branch
      %53 = sbr.rel (0) target = $region17
    $region16: #{gated_attention_forward.1} parent=1 // pred_region
      %s55 = ssub.s32 32, 32
      %56 = vsyncadd [#allocation13], %s55
      %s58 = sshll.u32 [#allocation12], 4
      %s59 = int_to_ptr.vmem [resolvable:$true] %s58
      %61 = dma.hbm_to_vmem [thread:$0]  %s4, 32, %s59, [#allocation13]
    $region17: #{gated_attention_forward.1} parent=1 // pred_fallthru
      _
    // Predicated region
    $region18: #{gated_attention_forward.1} parent=1 // pred_check
      _
    $region19: #{gated_attention_forward.1} parent=1 // pred_check_branch
      %63 = sbr.rel (0) target = $region21
    $region20: #{gated_attention_forward.1} parent=1 // pred_region
      _
    $region21: #{gated_attention_forward.1} parent=1 // pred_fallthru
      _
    // Predicated region
    $region22: #{gated_attention_forward.1} parent=1 // pred_check
      _
    $region23: #{gated_attention_forward.1} parent=1 // pred_check_branch
      %65 = sbr.rel (0) target = $region25
    $region24: #{gated_attention_forward.1} parent=1 // pred_region
      %66 = dma.done [#allocation7], 768
    $region25: #{gated_attention_forward.1} parent=1 // pred_fallthru
      _
    // Predicated region
    $region26: #{gated_attention_forward.1} parent=1 // pred_check
      _
    $region27: #{gated_attention_forward.1} parent=1 // pred_check_branch
      %68 = sbr.rel (0) target = $region29
    $region28: #{gated_attention_forward.1} parent=1 // pred_region
      %69 = dma.done [#allocation10], 49152
    $region29: #{gated_attention_forward.1} parent=1 // pred_fallthru
      _
    // Predicated region
    $region30: #{gated_attention_forward.1} parent=1 // pred_check
      _
    $region31: #{gated_attention_forward.1} parent=1 // pred_check_branch
      %71 = sbr.rel (0) target = $region33
    $region32: #{gated_attention_forward.1} parent=1 // pred_region
      %72 = dma.done [#allocation10], 64
    $region33: #{gated_attention_forward.1} parent=1 // pred_fallthru
      _
    // Predicated region
    $region34: #{gated_attention_forward.1} parent=1 // pred_check
      _
    $region35: #{gated_attention_forward.1} parent=1 // pred_check_branch
      %74 = sbr.rel (0) target = $region37
    $region36: #{gated_attention_forward.1} parent=1 // pred_region
      %75 = dma.done [#allocation13], 32
    $region37: #{gated_attention_forward.1} parent=1 // pred_fallthru
      _
    %v76 = vld [vmem:[#allocation6] sm:$0xff]
    %v77 = vld [vmem:[#allocation6 + $0x8] sm:$0xff]
    %v78 = vld [vmem:[#allocation6 + $0x10] sm:$0xff]
    %v79 = vld [vmem:[#allocation6 + $0x18] sm:$0xff]
    %v80 = vld [vmem:[#allocation6 + $0x20] sm:$0xff]
    %v81 = vld [vmem:[#allocation6 + $0x28] sm:$0xff]
    %v82 = vld [vmem:[#allocation9] sm:$0xff]
    %v83 = vld [vmem:[#allocation9 + $0x8] sm:$0xff]
    %v84 = vld [vmem:[#allocation9 + $0x10] sm:$0xff]
    %v85 = vld [vmem:[#allocation9 + $0x18] sm:$0xff]
    %v86 = vld [vmem:[#allocation9 + $0x20] sm:$0xff]
    %v87 = vld [vmem:[#allocation9 + $0x28] sm:$0xff]
    %v88 = vld [vmem:[#allocation9 + $0x30] sm:$0xff]
    %v89 = vld [vmem:[#allocation9 + $0x38] sm:$0xff]
    %v90 = vld [vmem:[#allocation9 + $0x40] sm:$0xff]
    %v91 = vld [vmem:[#allocation9 + $0x48] sm:$0xff]
    %v92 = vld [vmem:[#allocation9 + $0x50] sm:$0xff]
    %v93 = vld [vmem:[#allocation9 + $0x58] sm:$0xff]
    %v94 = vld [vmem:[#allocation9 + $0x60] sm:$0xff]
    %v95 = vld [vmem:[#allocation9 + $0x68] sm:$0xff]
    %v96 = vld [vmem:[#allocation9 + $0x70] sm:$0xff]
    %v97 = vld [vmem:[#allocation9 + $0x78] sm:$0xff]
    %v98 = vld [vmem:[#allocation9 + $0x80] sm:$0xff]
    %v99 = vld [vmem:[#allocation9 + $0x88] sm:$0xff]
    %v100 = vld [vmem:[#allocation9 + $0x90] sm:$0xff]
    %v101 = vld [vmem:[#allocation9 + $0x98] sm:$0xff]
    %v102 = vld [vmem:[#allocation9 + $0xa0] sm:$0xff]
    %v103 = vld [vmem:[#allocation9 + $0xa8] sm:$0xff]
    %v104 = vld [vmem:[#allocation9 + $0xb0] sm:$0xff]
    %v105 = vld [vmem:[#allocation9 + $0xb8] sm:$0xff]
    %v106 = vld [vmem:[#allocation9 + $0xc0] sm:$0xff]
    %v107 = vld [vmem:[#allocation9 + $0xc8] sm:$0xff]
    %v108 = vld [vmem:[#allocation9 + $0xd0] sm:$0xff]
    %v109 = vld [vmem:[#allocation9 + $0xd8] sm:$0xff]
    %v110 = vld [vmem:[#allocation9 + $0xe0] sm:$0xff]
    %v111 = vld [vmem:[#allocation9 + $0xe8] sm:$0xff]
    %v112 = vld [vmem:[#allocation9 + $0xf0] sm:$0xff]
    %v113 = vld [vmem:[#allocation9 + $0xf8] sm:$0xff]
    %v114 = vld [vmem:[#allocation9 + $0x100] sm:$0xff]
    %v115 = vld [vmem:[#allocation9 + $0x108] sm:$0xff]
    %v116 = vld [vmem:[#allocation9 + $0x110] sm:$0xff]
    %v117 = vld [vmem:[#allocation9 + $0x118] sm:$0xff]
    %v118 = vld [vmem:[#allocation9 + $0x120] sm:$0xff]
    %v119 = vld [vmem:[#allocation9 + $0x128] sm:$0xff]
    %v120 = vld [vmem:[#allocation9 + $0x130] sm:$0xff]
    %v121 = vld [vmem:[#allocation9 + $0x138] sm:$0xff]
    %v122 = vld [vmem:[#allocation9 + $0x140] sm:$0xff]
    %v123 = vld [vmem:[#allocation9 + $0x148] sm:$0xff]
    %v124 = vld [vmem:[#allocation9 + $0x150] sm:$0xff]
    %v125 = vld [vmem:[#allocation9 + $0x158] sm:$0xff]
    %v126 = vld [vmem:[#allocation9 + $0x160] sm:$0xff]
    %v127 = vld [vmem:[#allocation9 + $0x168] sm:$0xff]
    %v128 = vld [vmem:[#allocation9 + $0x170] sm:$0xff]
    %v129 = vld [vmem:[#allocation9 + $0x178] sm:$0xff]
    %v130 = vld [vmem:[#allocation9 + $0x180] sm:$0xff]
    %v131 = vld [vmem:[#allocation9 + $0x188] sm:$0xff]
    %v132 = vld [vmem:[#allocation9 + $0x190] sm:$0xff]
    %v133 = vld [vmem:[#allocation9 + $0x198] sm:$0xff]
    %v134 = vld [vmem:[#allocation9 + $0x1a0] sm:$0xff]
    %v135 = vld [vmem:[#allocation9 + $0x1a8] sm:$0xff]
    %v136 = vld [vmem:[#allocation9 + $0x1b0] sm:$0xff]
    %v137 = vld [vmem:[#allocation9 + $0x1b8] sm:$0xff]
    %v138 = vld [vmem:[#allocation9 + $0x1c0] sm:$0xff]
    %v139 = vld [vmem:[#allocation9 + $0x1c8] sm:$0xff]
    %v140 = vld [vmem:[#allocation9 + $0x1d0] sm:$0xff]
    %v141 = vld [vmem:[#allocation9 + $0x1d8] sm:$0xff]
    %v142 = vld [vmem:[#allocation9 + $0x1e0] sm:$0xff]
    %v143 = vld [vmem:[#allocation9 + $0x1e8] sm:$0xff]
    %v144 = vld [vmem:[#allocation9 + $0x1f0] sm:$0xff]
    %v145 = vld [vmem:[#allocation9 + $0x1f8] sm:$0xff]
    %v146 = vld [vmem:[#allocation9 + $0x200] sm:$0xff]
    %v147 = vld [vmem:[#allocation9 + $0x208] sm:$0xff]
    %v148 = vld [vmem:[#allocation9 + $0x210] sm:$0xff]
    %v149 = vld [vmem:[#allocation9 + $0x218] sm:$0xff]
    %v150 = vld [vmem:[#allocation9 + $0x220] sm:$0xff]
    %v151 = vld [vmem:[#allocation9 + $0x228] sm:$0xff]
    %v152 = vld [vmem:[#allocation9 + $0x230] sm:$0xff]
    %v153 = vld [vmem:[#allocation9 + $0x238] sm:$0xff]
    %v154 = vld [vmem:[#allocation9 + $0x240] sm:$0xff]
    %v155 = vld [vmem:[#allocation9 + $0x248] sm:$0xff]
    %v156 = vld [vmem:[#allocation9 + $0x250] sm:$0xff]
    %v157 = vld [vmem:[#allocation9 + $0x258] sm:$0xff]
    %v158 = vld [vmem:[#allocation9 + $0x260] sm:$0xff]
    %v159 = vld [vmem:[#allocation9 + $0x268] sm:$0xff]
    %v160 = vld [vmem:[#allocation9 + $0x270] sm:$0xff]
    %v161 = vld [vmem:[#allocation9 + $0x278] sm:$0xff]
    %v162 = vld [vmem:[#allocation9 + $0x280] sm:$0xff]
    %v163 = vld [vmem:[#allocation9 + $0x288] sm:$0xff]
    %v164 = vld [vmem:[#allocation9 + $0x290] sm:$0xff]
    %v165 = vld [vmem:[#allocation9 + $0x298] sm:$0xff]
    %v166 = vld [vmem:[#allocation9 + $0x2a0] sm:$0xff]
    %v167 = vld [vmem:[#allocation9 + $0x2a8] sm:$0xff]
    %v168 = vld [vmem:[#allocation9 + $0x2b0] sm:$0xff]
    %v169 = vld [vmem:[#allocation9 + $0x2b8] sm:$0xff]
    %v170 = vld [vmem:[#allocation9 + $0x2c0] sm:$0xff]
    %v171 = vld [vmem:[#allocation9 + $0x2c8] sm:$0xff]
    %v172 = vld [vmem:[#allocation9 + $0x2d0] sm:$0xff]
    %v173 = vld [vmem:[#allocation9 + $0x2d8] sm:$0xff]
    %v174 = vld [vmem:[#allocation9 + $0x2e0] sm:$0xff]
    %v175 = vld [vmem:[#allocation9 + $0x2e8] sm:$0xff]
    %v176 = vld [vmem:[#allocation9 + $0x2f0] sm:$0xff]
    %v177 = vld [vmem:[#allocation9 + $0x2f8] sm:$0xff]
    %v178 = vld [vmem:[#allocation9 + $0x300] sm:$0xff]
    %v179 = vld [vmem:[#allocation9 + $0x308] sm:$0xff]
    %v180 = vld [vmem:[#allocation9 + $0x310] sm:$0xff]
    %v181 = vld [vmem:[#allocation9 + $0x318] sm:$0xff]
    %v182 = vld [vmem:[#allocation9 + $0x320] sm:$0xff]
    %v183 = vld [vmem:[#allocation9 + $0x328] sm:$0xff]
    %v184 = vld [vmem:[#allocation9 + $0x330] sm:$0xff]
    %v185 = vld [vmem:[#allocation9 + $0x338] sm:$0xff]
    %v186 = vld [vmem:[#allocation9 + $0x340] sm:$0xff]
    %v187 = vld [vmem:[#allocation9 + $0x348] sm:$0xff]
    %v188 = vld [vmem:[#allocation9 + $0x350] sm:$0xff]
    %v189 = vld [vmem:[#allocation9 + $0x358] sm:$0xff]
    %v190 = vld [vmem:[#allocation9 + $0x360] sm:$0xff]
    %v191 = vld [vmem:[#allocation9 + $0x368] sm:$0xff]
    %v192 = vld [vmem:[#allocation9 + $0x370] sm:$0xff]
    %v193 = vld [vmem:[#allocation9 + $0x378] sm:$0xff]
    %v194 = vld [vmem:[#allocation9 + $0x380] sm:$0xff]
    %v195 = vld [vmem:[#allocation9 + $0x388] sm:$0xff]
    %v196 = vld [vmem:[#allocation9 + $0x390] sm:$0xff]
    %v197 = vld [vmem:[#allocation9 + $0x398] sm:$0xff]
    %v198 = vld [vmem:[#allocation9 + $0x3a0] sm:$0xff]
    %v199 = vld [vmem:[#allocation9 + $0x3a8] sm:$0xff]
    %v200 = vld [vmem:[#allocation9 + $0x3b0] sm:$0xff]
    %v201 = vld [vmem:[#allocation9 + $0x3b8] sm:$0xff]
    %v202 = vld [vmem:[#allocation9 + $0x3c0] sm:$0xff]
    %v203 = vld [vmem:[#allocation9 + $0x3c8] sm:$0xff]
    %v204 = vld [vmem:[#allocation9 + $0x3d0] sm:$0xff]
    %v205 = vld [vmem:[#allocation9 + $0x3d8] sm:$0xff]
    %v206 = vld [vmem:[#allocation9 + $0x3e0] sm:$0xff]
    %v207 = vld [vmem:[#allocation9 + $0x3e8] sm:$0xff]
    %v208 = vld [vmem:[#allocation9 + $0x3f0] sm:$0xff]
    %v209 = vld [vmem:[#allocation9 + $0x3f8] sm:$0xff]
    %v210 = vld [vmem:[#allocation9 + $0x400] sm:$0xff]
    %v211 = vld [vmem:[#allocation9 + $0x408] sm:$0xff]
    %v212 = vld [vmem:[#allocation9 + $0x410] sm:$0xff]
    %v213 = vld [vmem:[#allocation9 + $0x418] sm:$0xff]
    %v214 = vld [vmem:[#allocation9 + $0x420] sm:$0xff]
    %v215 = vld [vmem:[#allocation9 + $0x428] sm:$0xff]
    %v216 = vld [vmem:[#allocation9 + $0x430] sm:$0xff]
    %v217 = vld [vmem:[#allocation9 + $0x438] sm:$0xff]
    %v218 = vld [vmem:[#allocation9 + $0x440] sm:$0xff]
    %v219 = vld [vmem:[#allocation9 + $0x448] sm:$0xff]
    %v220 = vld [vmem:[#allocation9 + $0x450] sm:$0xff]
    %v221 = vld [vmem:[#allocation9 + $0x458] sm:$0xff]
    %v222 = vld [vmem:[#allocation9 + $0x460] sm:$0xff]
    %v223 = vld [vmem:[#allocation9 + $0x468] sm:$0xff]
    %v224 = vld [vmem:[#allocation9 + $0x470] sm:$0xff]
    %v225 = vld [vmem:[#allocation9 + $0x478] sm:$0xff]
    %v226 = vld [vmem:[#allocation9 + $0x480] sm:$0xff]
    %v227 = vld [vmem:[#allocation9 + $0x488] sm:$0xff]
    %v228 = vld [vmem:[#allocation9 + $0x490] sm:$0xff]
    %v229 = vld [vmem:[#allocation9 + $0x498] sm:$0xff]
    %v230 = vld [vmem:[#allocation9 + $0x4a0] sm:$0xff]
    %v231 = vld [vmem:[#allocation9 + $0x4a8] sm:$0xff]
    %v232 = vld [vmem:[#allocation9 + $0x4b0] sm:$0xff]
    %v233 = vld [vmem:[#allocation9 + $0x4b8] sm:$0xff]
    %v234 = vld [vmem:[#allocation9 + $0x4c0] sm:$0xff]
    %v235 = vld [vmem:[#allocation9 + $0x4c8] sm:$0xff]
    %v236 = vld [vmem:[#allocation9 + $0x4d0] sm:$0xff]
    %v237 = vld [vmem:[#allocation9 + $0x4d8] sm:$0xff]
    %v238 = vld [vmem:[#allocation9 + $0x4e0] sm:$0xff]
    %v239 = vld [vmem:[#allocation9 + $0x4e8] sm:$0xff]
    %v240 = vld [vmem:[#allocation9 + $0x4f0] sm:$0xff]
    %v241 = vld [vmem:[#allocation9 + $0x4f8] sm:$0xff]
    %v242 = vld [vmem:[#allocation9 + $0x500] sm:$0xff]
    %v243 = vld [vmem:[#allocation9 + $0x508] sm:$0xff]
    %v244 = vld [vmem:[#allocation9 + $0x510] sm:$0xff]
    %v245 = vld [vmem:[#allocation9 + $0x518] sm:$0xff]
    %v246 = vld [vmem:[#allocation9 + $0x520] sm:$0xff]
    %v247 = vld [vmem:[#allocation9 + $0x528] sm:$0xff]
    %v248 = vld [vmem:[#allocation9 + $0x530] sm:$0xff]
    %v249 = vld [vmem:[#allocation9 + $0x538] sm:$0xff]
    %v250 = vld [vmem:[#allocation9 + $0x540] sm:$0xff]
    %v251 = vld [vmem:[#allocation9 + $0x548] sm:$0xff]
    %v252 = vld [vmem:[#allocation9 + $0x550] sm:$0xff]
    %v253 = vld [vmem:[#allocation9 + $0x558] sm:$0xff]
    %v254 = vld [vmem:[#allocation9 + $0x560] sm:$0xff]
    %v255 = vld [vmem:[#allocation9 + $0x568] sm:$0xff]
    %v256 = vld [vmem:[#allocation9 + $0x570] sm:$0xff]
    %v257 = vld [vmem:[#allocation9 + $0x578] sm:$0xff]
    %v258 = vld [vmem:[#allocation9 + $0x580] sm:$0xff]
    %v259 = vld [vmem:[#allocation9 + $0x588] sm:$0xff]
    %v260 = vld [vmem:[#allocation9 + $0x590] sm:$0xff]
    %v261 = vld [vmem:[#allocation9 + $0x598] sm:$0xff]
    %v262 = vld [vmem:[#allocation9 + $0x5a0] sm:$0xff]
    %v263 = vld [vmem:[#allocation9 + $0x5a8] sm:$0xff]
    %v264 = vld [vmem:[#allocation9 + $0x5b0] sm:$0xff]
    %v265 = vld [vmem:[#allocation9 + $0x5b8] sm:$0xff]
    %v266 = vld [vmem:[#allocation9 + $0x5c0] sm:$0xff]
    %v267 = vld [vmem:[#allocation9 + $0x5c8] sm:$0xff]
    %v268 = vld [vmem:[#allocation9 + $0x5d0] sm:$0xff]
    %v269 = vld [vmem:[#allocation9 + $0x5d8] sm:$0xff]
    %v270 = vld [vmem:[#allocation9 + $0x5e0] sm:$0xff]
    %v271 = vld [vmem:[#allocation9 + $0x5e8] sm:$0xff]
    %v272 = vld [vmem:[#allocation9 + $0x5f0] sm:$0xff]
    %v273 = vld [vmem:[#allocation9 + $0x5f8] sm:$0xff]
    %v274 = vld [vmem:[#allocation9 + $0x600] sm:$0xff]
    %v275 = vld [vmem:[#allocation9 + $0x608] sm:$0xff]
    %v276 = vld [vmem:[#allocation9 + $0x610] sm:$0xff]
    %v277 = vld [vmem:[#allocation9 + $0x618] sm:$0xff]
    %v278 = vld [vmem:[#allocation9 + $0x620] sm:$0xff]
    %v279 = vld [vmem:[#allocation9 + $0x628] sm:$0xff]
    %v280 = vld [vmem:[#allocation9 + $0x630] sm:$0xff]
    %v281 = vld [vmem:[#allocation9 + $0x638] sm:$0xff]
    %v282 = vld [vmem:[#allocation9 + $0x640] sm:$0xff]
    %v283 = vld [vmem:[#allocation9 + $0x648] sm:$0xff]
    %v284 = vld [vmem:[#allocation9 + $0x650] sm:$0xff]
    %v285 = vld [vmem:[#allocation9 + $0x658] sm:$0xff]
    %v286 = vld [vmem:[#allocation9 + $0x660] sm:$0xff]
    %v287 = vld [vmem:[#allocation9 + $0x668] sm:$0xff]
    %v288 = vld [vmem:[#allocation9 + $0x670] sm:$0xff]
    %v289 = vld [vmem:[#allocation9 + $0x678] sm:$0xff]
    %v290 = vld [vmem:[#allocation9 + $0x680] sm:$0xff]
    %v291 = vld [vmem:[#allocation9 + $0x688] sm:$0xff]
    %v292 = vld [vmem:[#allocation9 + $0x690] sm:$0xff]
    %v293 = vld [vmem:[#allocation9 + $0x698] sm:$0xff]
    %v294 = vld [vmem:[#allocation9 + $0x6a0] sm:$0xff]
    %v295 = vld [vmem:[#allocation9 + $0x6a8] sm:$0xff]
    %v296 = vld [vmem:[#allocation9 + $0x6b0] sm:$0xff]
    %v297 = vld [vmem:[#allocation9 + $0x6b8] sm:$0xff]
    %v298 = vld [vmem:[#allocation9 + $0x6c0] sm:$0xff]
    %v299 = vld [vmem:[#allocation9 + $0x6c8] sm:$0xff]
    %v300 = vld [vmem:[#allocation9 + $0x6d0] sm:$0xff]
    %v301 = vld [vmem:[#allocation9 + $0x6d8] sm:$0xff]
    %v302 = vld [vmem:[#allocation9 + $0x6e0] sm:$0xff]
    %v303 = vld [vmem:[#allocation9 + $0x6e8] sm:$0xff]
    %v304 = vld [vmem:[#allocation9 + $0x6f0] sm:$0xff]
    %v305 = vld [vmem:[#allocation9 + $0x6f8] sm:$0xff]
    %v306 = vld [vmem:[#allocation9 + $0x700] sm:$0xff]
    %v307 = vld [vmem:[#allocation9 + $0x708] sm:$0xff]
    %v308 = vld [vmem:[#allocation9 + $0x710] sm:$0xff]
    %v309 = vld [vmem:[#allocation9 + $0x718] sm:$0xff]
    %v310 = vld [vmem:[#allocation9 + $0x720] sm:$0xff]
    %v311 = vld [vmem:[#allocation9 + $0x728] sm:$0xff]
    %v312 = vld [vmem:[#allocation9 + $0x730] sm:$0xff]
    %v313 = vld [vmem:[#allocation9 + $0x738] sm:$0xff]
    %v314 = vld [vmem:[#allocation9 + $0x740] sm:$0xff]
    %v315 = vld [vmem:[#allocation9 + $0x748] sm:$0xff]
    %v316 = vld [vmem:[#allocation9 + $0x750] sm:$0xff]
    %v317 = vld [vmem:[#allocation9 + $0x758] sm:$0xff]
    %v318 = vld [vmem:[#allocation9 + $0x760] sm:$0xff]
    %v319 = vld [vmem:[#allocation9 + $0x768] sm:$0xff]
    %v320 = vld [vmem:[#allocation9 + $0x770] sm:$0xff]
    %v321 = vld [vmem:[#allocation9 + $0x778] sm:$0xff]
    %v322 = vld [vmem:[#allocation9 + $0x780] sm:$0xff]
    %v323 = vld [vmem:[#allocation9 + $0x788] sm:$0xff]
    %v324 = vld [vmem:[#allocation9 + $0x790] sm:$0xff]
    %v325 = vld [vmem:[#allocation9 + $0x798] sm:$0xff]
    %v326 = vld [vmem:[#allocation9 + $0x7a0] sm:$0xff]
    %v327 = vld [vmem:[#allocation9 + $0x7a8] sm:$0xff]
    %v328 = vld [vmem:[#allocation9 + $0x7b0] sm:$0xff]
    %v329 = vld [vmem:[#allocation9 + $0x7b8] sm:$0xff]
    %v330 = vld [vmem:[#allocation9 + $0x7c0] sm:$0xff]
    %v331 = vld [vmem:[#allocation9 + $0x7c8] sm:$0xff]
    %v332 = vld [vmem:[#allocation9 + $0x7d0] sm:$0xff]
    %v333 = vld [vmem:[#allocation9 + $0x7d8] sm:$0xff]
    %v334 = vld [vmem:[#allocation9 + $0x7e0] sm:$0xff]
    %v335 = vld [vmem:[#allocation9 + $0x7e8] sm:$0xff]
    %v336 = vld [vmem:[#allocation9 + $0x7f0] sm:$0xff]
    %v337 = vld [vmem:[#allocation9 + $0x7f8] sm:$0xff]
    %v338 = vld [vmem:[#allocation9 + $0x800] sm:$0xff]
    %v339 = vld [vmem:[#allocation9 + $0x808] sm:$0xff]
    %v340 = vld [vmem:[#allocation9 + $0x810] sm:$0xff]
    %v341 = vld [vmem:[#allocation9 + $0x818] sm:$0xff]
    %v342 = vld [vmem:[#allocation9 + $0x820] sm:$0xff]
    %v343 = vld [vmem:[#allocation9 + $0x828] sm:$0xff]
    %v344 = vld [vmem:[#allocation9 + $0x830] sm:$0xff]
    %v345 = vld [vmem:[#allocation9 + $0x838] sm:$0xff]
    %v346 = vld [vmem:[#allocation9 + $0x840] sm:$0xff]
    %v347 = vld [vmem:[#allocation9 + $0x848] sm:$0xff]
    %v348 = vld [vmem:[#allocation9 + $0x850] sm:$0xff]
    %v349 = vld [vmem:[#allocation9 + $0x858] sm:$0xff]
    %v350 = vld [vmem:[#allocation9 + $0x860] sm:$0xff]
    %v351 = vld [vmem:[#allocation9 + $0x868] sm:$0xff]
    %v352 = vld [vmem:[#allocation9 + $0x870] sm:$0xff]
    %v353 = vld [vmem:[#allocation9 + $0x878] sm:$0xff]
    %v354 = vld [vmem:[#allocation9 + $0x880] sm:$0xff]
    %v355 = vld [vmem:[#allocation9 + $0x888] sm:$0xff]
    %v356 = vld [vmem:[#allocation9 + $0x890] sm:$0xff]
    %v357 = vld [vmem:[#allocation9 + $0x898] sm:$0xff]
    %v358 = vld [vmem:[#allocation9 + $0x8a0] sm:$0xff]
    %v359 = vld [vmem:[#allocation9 + $0x8a8] sm:$0xff]
    %v360 = vld [vmem:[#allocation9 + $0x8b0] sm:$0xff]
    %v361 = vld [vmem:[#allocation9 + $0x8b8] sm:$0xff]
    %v362 = vld [vmem:[#allocation9 + $0x8c0] sm:$0xff]
    %v363 = vld [vmem:[#allocation9 + $0x8c8] sm:$0xff]
    %v364 = vld [vmem:[#allocation9 + $0x8d0] sm:$0xff]
    %v365 = vld [vmem:[#allocation9 + $0x8d8] sm:$0xff]
    %v366 = vld [vmem:[#allocation9 + $0x8e0] sm:$0xff]
    %v367 = vld [vmem:[#allocation9 + $0x8e8] sm:$0xff]
    %v368 = vld [vmem:[#allocation9 + $0x8f0] sm:$0xff]
    %v369 = vld [vmem:[#allocation9 + $0x8f8] sm:$0xff]
    %v370 = vld [vmem:[#allocation9 + $0x900] sm:$0xff]
    %v371 = vld [vmem:[#allocation9 + $0x908] sm:$0xff]
    %v372 = vld [vmem:[#allocation9 + $0x910] sm:$0xff]
    %v373 = vld [vmem:[#allocation9 + $0x918] sm:$0xff]
    %v374 = vld [vmem:[#allocation9 + $0x920] sm:$0xff]
    %v375 = vld [vmem:[#allocation9 + $0x928] sm:$0xff]
    %v376 = vld [vmem:[#allocation9 + $0x930] sm:$0xff]
    %v377 = vld [vmem:[#allocation9 + $0x938] sm:$0xff]
    %v378 = vld [vmem:[#allocation9 + $0x940] sm:$0xff]
    %v379 = vld [vmem:[#allocation9 + $0x948] sm:$0xff]
    %v380 = vld [vmem:[#allocation9 + $0x950] sm:$0xff]
    %v381 = vld [vmem:[#allocation9 + $0x958] sm:$0xff]
    %v382 = vld [vmem:[#allocation9 + $0x960] sm:$0xff]
    %v383 = vld [vmem:[#allocation9 + $0x968] sm:$0xff]
    %v384 = vld [vmem:[#allocation9 + $0x970] sm:$0xff]
    %v385 = vld [vmem:[#allocation9 + $0x978] sm:$0xff]
    %v386 = vld [vmem:[#allocation9 + $0x980] sm:$0xff]
    %v387 = vld [vmem:[#allocation9 + $0x988] sm:$0xff]
    %v388 = vld [vmem:[#allocation9 + $0x990] sm:$0xff]
    %v389 = vld [vmem:[#allocation9 + $0x998] sm:$0xff]
    %v390 = vld [vmem:[#allocation9 + $0x9a0] sm:$0xff]
    %v391 = vld [vmem:[#allocation9 + $0x9a8] sm:$0xff]
    %v392 = vld [vmem:[#allocation9 + $0x9b0] sm:$0xff]
    %v393 = vld [vmem:[#allocation9 + $0x9b8] sm:$0xff]
    %v394 = vld [vmem:[#allocation9 + $0x9c0] sm:$0xff]
    %v395 = vld [vmem:[#allocation9 + $0x9c8] sm:$0xff]
    %v396 = vld [vmem:[#allocation9 + $0x9d0] sm:$0xff]
    %v397 = vld [vmem:[#allocation9 + $0x9d8] sm:$0xff]
    %v398 = vld [vmem:[#allocation9 + $0x9e0] sm:$0xff]
    %v399 = vld [vmem:[#allocation9 + $0x9e8] sm:$0xff]
    %v400 = vld [vmem:[#allocation9 + $0x9f0] sm:$0xff]
    %v401 = vld [vmem:[#allocation9 + $0x9f8] sm:$0xff]
    %v402 = vld [vmem:[#allocation9 + $0xa00] sm:$0xff]
    %v403 = vld [vmem:[#allocation9 + $0xa08] sm:$0xff]
    %v404 = vld [vmem:[#allocation9 + $0xa10] sm:$0xff]
    %v405 = vld [vmem:[#allocation9 + $0xa18] sm:$0xff]
    %v406 = vld [vmem:[#allocation9 + $0xa20] sm:$0xff]
    %v407 = vld [vmem:[#allocation9 + $0xa28] sm:$0xff]
    %v408 = vld [vmem:[#allocation9 + $0xa30] sm:$0xff]
    %v409 = vld [vmem:[#allocation9 + $0xa38] sm:$0xff]
    %v410 = vld [vmem:[#allocation9 + $0xa40] sm:$0xff]
    %v411 = vld [vmem:[#allocation9 + $0xa48] sm:$0xff]
    %v412 = vld [vmem:[#allocation9 + $0xa50] sm:$0xff]
    %v413 = vld [vmem:[#allocation9 + $0xa58] sm:$0xff]
    %v414 = vld [vmem:[#allocation9 + $0xa60] sm:$0xff]
    %v415 = vld [vmem:[#allocation9 + $0xa68] sm:$0xff]
    %v416 = vld [vmem:[#allocation9 + $0xa70] sm:$0xff]
    %v417 = vld [vmem:[#allocation9 + $0xa78] sm:$0xff]
    %v418 = vld [vmem:[#allocation9 + $0xa80] sm:$0xff]
    %v419 = vld [vmem:[#allocation9 + $0xa88] sm:$0xff]
    %v420 = vld [vmem:[#allocation9 + $0xa90] sm:$0xff]
    %v421 = vld [vmem:[#allocation9 + $0xa98] sm:$0xff]
    %v422 = vld [vmem:[#allocation9 + $0xaa0] sm:$0xff]
    %v423 = vld [vmem:[#allocation9 + $0xaa8] sm:$0xff]
    %v424 = vld [vmem:[#allocation9 + $0xab0] sm:$0xff]
    %v425 = vld [vmem:[#allocation9 + $0xab8] sm:$0xff]
    %v426 = vld [vmem:[#allocation9 + $0xac0] sm:$0xff]
    %v427 = vld [vmem:[#allocation9 + $0xac8] sm:$0xff]
    %v428 = vld [vmem:[#allocation9 + $0xad0] sm:$0xff]
    %v429 = vld [vmem:[#allocation9 + $0xad8] sm:$0xff]
    %v430 = vld [vmem:[#allocation9 + $0xae0] sm:$0xff]
    %v431 = vld [vmem:[#allocation9 + $0xae8] sm:$0xff]
    %v432 = vld [vmem:[#allocation9 + $0xaf0] sm:$0xff]
    %v433 = vld [vmem:[#allocation9 + $0xaf8] sm:$0xff]
    %v434 = vld [vmem:[#allocation9 + $0xb00] sm:$0xff]
    %v435 = vld [vmem:[#allocation9 + $0xb08] sm:$0xff]
    %v436 = vld [vmem:[#allocation9 + $0xb10] sm:$0xff]
    %v437 = vld [vmem:[#allocation9 + $0xb18] sm:$0xff]
    %v438 = vld [vmem:[#allocation9 + $0xb20] sm:$0xff]
    %v439 = vld [vmem:[#allocation9 + $0xb28] sm:$0xff]
    %v440 = vld [vmem:[#allocation9 + $0xb30] sm:$0xff]
    %v441 = vld [vmem:[#allocation9 + $0xb38] sm:$0xff]
    %v442 = vld [vmem:[#allocation9 + $0xb40] sm:$0xff]
    %v443 = vld [vmem:[#allocation9 + $0xb48] sm:$0xff]
    %v444 = vld [vmem:[#allocation9 + $0xb50] sm:$0xff]
    %v445 = vld [vmem:[#allocation9 + $0xb58] sm:$0xff]
    %v446 = vld [vmem:[#allocation9 + $0xb60] sm:$0xff]
    %v447 = vld [vmem:[#allocation9 + $0xb68] sm:$0xff]
    %v448 = vld [vmem:[#allocation9 + $0xb70] sm:$0xff]
    %v449 = vld [vmem:[#allocation9 + $0xb78] sm:$0xff]
    %v450 = vld [vmem:[#allocation9 + $0xb80] sm:$0xff]
    %v451 = vld [vmem:[#allocation9 + $0xb88] sm:$0xff]
    %v452 = vld [vmem:[#allocation9 + $0xb90] sm:$0xff]
    %v453 = vld [vmem:[#allocation9 + $0xb98] sm:$0xff]
    %v454 = vld [vmem:[#allocation9 + $0xba0] sm:$0xff]
    %v455 = vld [vmem:[#allocation9 + $0xba8] sm:$0xff]
    %v456 = vld [vmem:[#allocation9 + $0xbb0] sm:$0xff]
    %v457 = vld [vmem:[#allocation9 + $0xbb8] sm:$0xff]
    %v458 = vld [vmem:[#allocation9 + $0xbc0] sm:$0xff]
    %v459 = vld [vmem:[#allocation9 + $0xbc8] sm:$0xff]
    %v460 = vld [vmem:[#allocation9 + $0xbd0] sm:$0xff]
    %v461 = vld [vmem:[#allocation9 + $0xbd8] sm:$0xff]
    %v462 = vld [vmem:[#allocation9 + $0xbe0] sm:$0xff]
    %v463 = vld [vmem:[#allocation9 + $0xbe8] sm:$0xff]
    %v464 = vld [vmem:[#allocation9 + $0xbf0] sm:$0xff]
    %v465 = vld [vmem:[#allocation9 + $0xbf8] sm:$0xff]
    %v466 = vld [vmem:[#allocation11] sm:$0xf]
    %v468 = vlaneseq
    %v469 = vshrl.u32 %v468, 7
    %v470 = vsub.s32 0, %v469
    %v471 = vrot.slane %v466, %v470
    %v472 = vlaneseq
    %v473 = vshrl.u32 %v472, 7
    %v474 = vsub.s32 1, %v473
    %v475 = vrot.slane %v466, %v474
    %v476 = vlaneseq
    %v477 = vshrl.u32 %v476, 7
    %v478 = vsub.s32 2, %v477
    %v479 = vrot.slane %v466, %v478
    %v480 = vlaneseq
    %v481 = vshrl.u32 %v480, 7
    %v482 = vsub.s32 3, %v481
    %v483 = vrot.slane %v466, %v482
    %488 = vmatprep.subr.mxu0 %v83
    %489 = vmatpush1.msra.mxu0 %v82
    %490 = vmatprep.subr.mxu0 %v87
    %491 = vmatpush1.msra.mxu0 %v86
    %492 = vmatprep.subr.mxu0 %v91
    %493 = vmatpush1.msra.mxu0 %v90
    %494 = vmatprep.subr.mxu0 %v95
    %495 = vmatpush1.msra.mxu0 %v94
    %496 = vmatprep.subr.mxu0 %v99
    %497 = vmatpush1.msra.mxu0 %v98
    %498 = vmatprep.subr.mxu0 %v103
    %499 = vmatpush1.msra.mxu0 %v102
    %500 = vmatprep.subr.mxu0 %v107
    %501 = vmatpush1.msra.mxu0 %v106
    %502 = vmatprep.subr.mxu0 %v111
    %503 = vmatpush1.msra.mxu0 %v110
    %504 = vmatprep.subr.mxu0 %v115
    %505 = vmatpush1.msra.mxu0 %v114
    %506 = vmatprep.subr.mxu0 %v119
    %507 = vmatpush1.msra.mxu0 %v118
    %508 = vmatprep.subr.mxu0 %v123
    %509 = vmatpush1.msra.mxu0 %v122
    %510 = vmatprep.subr.mxu0 %v127
    %511 = vmatpush1.msra.mxu0 %v126
    %512 = vmatprep.subr.mxu0 %v131
    %513 = vmatpush1.msra.mxu0 %v130
    %514 = vmatprep.subr.mxu0 %v135
    %515 = vmatpush1.msra.mxu0 %v134
    %516 = vmatprep.subr.mxu0 %v139
    %517 = vmatpush1.msra.mxu0 %v138
    %518 = vmatprep.subr.mxu0 %v143
    %519 = vmatpush1.msra.mxu0 %v142
    %520 = vmatprep.subr.mxu0 %v147
    %521 = vmatpush1.msra.mxu0 %v146
    %522 = vmatprep.subr.mxu0 %v151
    %523 = vmatpush1.msra.mxu0 %v150
    %524 = vmatprep.subr.mxu0 %v155
    %525 = vmatpush1.msra.mxu0 %v154
    %526 = vmatprep.subr.mxu0 %v159
    %527 = vmatpush1.msra.mxu0 %v158
    %528 = vmatprep.subr.mxu0 %v163
    %529 = vmatpush1.msra.mxu0 %v162
    %530 = vmatprep.subr.mxu0 %v167
    %531 = vmatpush1.msra.mxu0 %v166
    %532 = vmatprep.subr.mxu0 %v171
    %533 = vmatpush1.msra.mxu0 %v170
    %534 = vmatprep.subr.mxu0 %v175
    %535 = vmatpush1.msra.mxu0 %v174
    %536 = vmatprep.subr.mxu0 %v179
    %537 = vmatpush1.msra.mxu0 %v178
    %538 = vmatprep.subr.mxu0 %v183
    %539 = vmatpush1.msra.mxu0 %v182
    %540 = vmatprep.subr.mxu0 %v187
    %541 = vmatpush1.msra.mxu0 %v186
    %542 = vmatprep.subr.mxu0 %v191
    %543 = vmatpush1.msra.mxu0 %v190
    %544 = vmatprep.subr.mxu0 %v195
    %545 = vmatpush1.msra.mxu0 %v194
    %546 = vmatprep.subr.mxu0 %v199
    %547 = vmatpush1.msra.mxu0 %v198
    %548 = vmatprep.subr.mxu0 %v203
    %549 = vmatpush1.msra.mxu0 %v202
    %550 = vmatprep.subr.mxu0 %v207
    %551 = vmatpush1.msra.mxu0 %v206
    %552 = vmatprep.mubr.f32.mxu0 %v77
    %553 = vmatmul.mubr.f32.gmra.mrb[0].mxu0 %v76
    %v554 = vpop.f32.mrb[0].mxu0
    %v555 = vadd.f32 %v471, %v554
    %v556 = vpop.f32.mrb[0].mxu0
    %v557 = vadd.f32 %v475, %v556
    %558 = vdwg.mxu0
    %559 = vmatprep.subr.mxu0 %v211
    %560 = vmatpush1.msra.mxu0 %v210
    %561 = vmatprep.subr.mxu0 %v215
    %562 = vmatpush1.msra.mxu0 %v214
    %563 = vmatprep.subr.mxu0 %v219
    %564 = vmatpush1.msra.mxu0 %v218
    %565 = vmatprep.subr.mxu0 %v223
    %566 = vmatpush1.msra.mxu0 %v222
    %567 = vmatprep.subr.mxu0 %v227
    %568 = vmatpush1.msra.mxu0 %v226
    %569 = vmatprep.subr.mxu0 %v231
    %570 = vmatpush1.msra.mxu0 %v230
    %571 = vmatprep.subr.mxu0 %v235
    %572 = vmatpush1.msra.mxu0 %v234
    %573 = vmatprep.subr.mxu0 %v239
    %574 = vmatpush1.msra.mxu0 %v238
    %575 = vmatprep.subr.mxu0 %v243
    %576 = vmatpush1.msra.mxu0 %v242
    %577 = vmatprep.subr.mxu0 %v247
    %578 = vmatpush1.msra.mxu0 %v246
    %579 = vmatprep.subr.mxu0 %v251
    %580 = vmatpush1.msra.mxu0 %v250
    %581 = vmatprep.subr.mxu0 %v255
    %582 = vmatpush1.msra.mxu0 %v254
    %583 = vmatprep.subr.mxu0 %v259
    %584 = vmatpush1.msra.mxu0 %v258
    %585 = vmatprep.subr.mxu0 %v263
    %586 = vmatpush1.msra.mxu0 %v262
    %587 = vmatprep.subr.mxu0 %v267
    %588 = vmatpush1.msra.mxu0 %v266
    %589 = vmatprep.subr.mxu0 %v271
    %590 = vmatpush1.msra.mxu0 %v270
    %591 = vmatprep.subr.mxu0 %v275
    %592 = vmatpush1.msra.mxu0 %v274
    %593 = vmatprep.subr.mxu0 %v279
    %594 = vmatpush1.msra.mxu0 %v278
    %595 = vmatprep.subr.mxu0 %v283
    %596 = vmatpush1.msra.mxu0 %v282
    %597 = vmatprep.subr.mxu0 %v287
    %598 = vmatpush1.msra.mxu0 %v286
    %599 = vmatprep.subr.mxu0 %v291
    %600 = vmatpush1.msra.mxu0 %v290
    %601 = vmatprep.subr.mxu0 %v295
    %602 = vmatpush1.msra.mxu0 %v294
    %603 = vmatprep.subr.mxu0 %v299
    %604 = vmatpush1.msra.mxu0 %v298
    %605 = vmatprep.subr.mxu0 %v303
    %606 = vmatpush1.msra.mxu0 %v302
    %607 = vmatprep.subr.mxu0 %v307
    %608 = vmatpush1.msra.mxu0 %v306
    %609 = vmatprep.subr.mxu0 %v311
    %610 = vmatpush1.msra.mxu0 %v310
    %611 = vmatprep.subr.mxu0 %v315
    %612 = vmatpush1.msra.mxu0 %v314
    %613 = vmatprep.subr.mxu0 %v319
    %614 = vmatpush1.msra.mxu0 %v318
    %615 = vmatprep.subr.mxu0 %v323
    %616 = vmatpush1.msra.mxu0 %v322
    %617 = vmatprep.subr.mxu0 %v327
    %618 = vmatpush1.msra.mxu0 %v326
    %619 = vmatprep.subr.mxu0 %v331
    %620 = vmatpush1.msra.mxu0 %v330
    %621 = vmatprep.subr.mxu0 %v335
    %622 = vmatpush1.msra.mxu0 %v334
    %623 = vmatprep.mubr.f32.mxu0 %v79
    %624 = vmatmul.mubr.f32.gmra.mrb[0].mxu0 %v78
    %v625 = vpop.f32.mrb[0].mxu0
    %v626 = vadd.f32 %v555, %v625
    %v627 = vpop.f32.mrb[0].mxu0
    %v628 = vadd.f32 %v557, %v627
    %629 = vdwg.mxu0
    %630 = vmatprep.subr.mxu0 %v339
    %631 = vmatpush1.msra.mxu0 %v338
    %632 = vmatprep.subr.mxu0 %v343
    %633 = vmatpush1.msra.mxu0 %v342
    %634 = vmatprep.subr.mxu0 %v347
    %635 = vmatpush1.msra.mxu0 %v346
    %636 = vmatprep.subr.mxu0 %v351
    %637 = vmatpush1.msra.mxu0 %v350
    %638 = vmatprep.subr.mxu0 %v355
    %639 = vmatpush1.msra.mxu0 %v354
    %640 = vmatprep.subr.mxu0 %v359
    %641 = vmatpush1.msra.mxu0 %v358
    %642 = vmatprep.subr.mxu0 %v363
    %643 = vmatpush1.msra.mxu0 %v362
    %644 = vmatprep.subr.mxu0 %v367
    %645 = vmatpush1.msra.mxu0 %v366
    %646 = vmatprep.subr.mxu0 %v371
    %647 = vmatpush1.msra.mxu0 %v370
    %648 = vmatprep.subr.mxu0 %v375
    %649 = vmatpush1.msra.mxu0 %v374
    %650 = vmatprep.subr.mxu0 %v379
    %651 = vmatpush1.msra.mxu0 %v378
    %652 = vmatprep.subr.mxu0 %v383
    %653 = vmatpush1.msra.mxu0 %v382
    %654 = vmatprep.subr.mxu0 %v387
    %655 = vmatpush1.msra.mxu0 %v386
    %656 = vmatprep.subr.mxu0 %v391
    %657 = vmatpush1.msra.mxu0 %v390
    %658 = vmatprep.subr.mxu0 %v395
    %659 = vmatpush1.msra.mxu0 %v394
    %660 = vmatprep.subr.mxu0 %v399
    %661 = vmatpush1.msra.mxu0 %v398
    %662 = vmatprep.subr.mxu0 %v403
    %663 = vmatpush1.msra.mxu0 %v402
    %664 = vmatprep.subr.mxu0 %v407
    %665 = vmatpush1.msra.mxu0 %v406
    %666 = vmatprep.subr.mxu0 %v411
    %667 = vmatpush1.msra.mxu0 %v410
    %668 = vmatprep.subr.mxu0 %v415
    %669 = vmatpush1.msra.mxu0 %v414
    %670 = vmatprep.subr.mxu0 %v419
    %671 = vmatpush1.msra.mxu0 %v418
    %672 = vmatprep.subr.mxu0 %v423
    %673 = vmatpush1.msra.mxu0 %v422
    %674 = vmatprep.subr.mxu0 %v427
    %675 = vmatpush1.msra.mxu0 %v426
    %676 = vmatprep.subr.mxu0 %v431
    %677 = vmatpush1.msra.mxu0 %v430
    %678 = vmatprep.subr.mxu0 %v435
    %679 = vmatpush1.msra.mxu0 %v434
    %680 = vmatprep.subr.mxu0 %v439
    %681 = vmatpush1.msra.mxu0 %v438
    %682 = vmatprep.subr.mxu0 %v443
    %683 = vmatpush1.msra.mxu0 %v442
    %684 = vmatprep.subr.mxu0 %v447
    %685 = vmatpush1.msra.mxu0 %v446
    %686 = vmatprep.subr.mxu0 %v451
    %687 = vmatpush1.msra.mxu0 %v450
    %688 = vmatprep.subr.mxu0 %v455
    %689 = vmatpush1.msra.mxu0 %v454
    %690 = vmatprep.subr.mxu0 %v459
    %691 = vmatpush1.msra.mxu0 %v458
    %692 = vmatprep.subr.mxu0 %v463
    %693 = vmatpush1.msra.mxu0 %v462
    %694 = vmatprep.mubr.f32.mxu0 %v81
    %695 = vmatmul.mubr.f32.gmra.mrb[0].mxu0 %v80
    %v696 = vpop.f32.mrb[0].mxu0
    %v697 = vadd.f32 %v626, %v696
    %v698 = vpop.f32.mrb[0].mxu0
    %v699 = vadd.f32 %v628, %v698
    %700 = vdwg.mxu0
    %701 = vmatprep.subr.mxu0 %v85
    %702 = vmatpush1.msra.mxu0 %v84
    %703 = vmatprep.subr.mxu0 %v89
    %704 = vmatpush1.msra.mxu0 %v88
    %705 = vmatprep.subr.mxu0 %v93
    %706 = vmatpush1.msra.mxu0 %v92
    %707 = vmatprep.subr.mxu0 %v97
    %708 = vmatpush1.msra.mxu0 %v96
    %709 = vmatprep.subr.mxu0 %v101
    %710 = vmatpush1.msra.mxu0 %v100
    %711 = vmatprep.subr.mxu0 %v105
    %712 = vmatpush1.msra.mxu0 %v104
    %713 = vmatprep.subr.mxu0 %v109
    %714 = vmatpush1.msra.mxu0 %v108
    %715 = vmatprep.subr.mxu0 %v113
    %716 = vmatpush1.msra.mxu0 %v112
    %717 = vmatprep.subr.mxu0 %v117
    %718 = vmatpush1.msra.mxu0 %v116
    %719 = vmatprep.subr.mxu0 %v121
    %720 = vmatpush1.msra.mxu0 %v120
    %721 = vmatprep.subr.mxu0 %v125
    %722 = vmatpush1.msra.mxu0 %v124
    %723 = vmatprep.subr.mxu0 %v129
    %724 = vmatpush1.msra.mxu0 %v128
    %725 = vmatprep.subr.mxu0 %v133
    %726 = vmatpush1.msra.mxu0 %v132
    %727 = vmatprep.subr.mxu0 %v137
    %728 = vmatpush1.msra.mxu0 %v136
    %729 = vmatprep.subr.mxu0 %v141
    %730 = vmatpush1.msra.mxu0 %v140
    %731 = vmatprep.subr.mxu0 %v145
    %732 = vmatpush1.msra.mxu0 %v144
    %733 = vmatprep.subr.mxu0 %v149
    %734 = vmatpush1.msra.mxu0 %v148
    %735 = vmatprep.subr.mxu0 %v153
    %736 = vmatpush1.msra.mxu0 %v152
    %737 = vmatprep.subr.mxu0 %v157
    %738 = vmatpush1.msra.mxu0 %v156
    %739 = vmatprep.subr.mxu0 %v161
    %740 = vmatpush1.msra.mxu0 %v160
    %741 = vmatprep.subr.mxu0 %v165
    %742 = vmatpush1.msra.mxu0 %v164
    %743 = vmatprep.subr.mxu0 %v169
    %744 = vmatpush1.msra.mxu0 %v168
    %745 = vmatprep.subr.mxu0 %v173
    %746 = vmatpush1.msra.mxu0 %v172
    %747 = vmatprep.subr.mxu0 %v177
    %748 = vmatpush1.msra.mxu0 %v176
    %749 = vmatprep.subr.mxu0 %v181
    %750 = vmatpush1.msra.mxu0 %v180
    %751 = vmatprep.subr.mxu0 %v185
    %752 = vmatpush1.msra.mxu0 %v184
    %753 = vmatprep.subr.mxu0 %v189
    %754 = vmatpush1.msra.mxu0 %v188
    %755 = vmatprep.subr.mxu0 %v193
    %756 = vmatpush1.msra.mxu0 %v192
    %757 = vmatprep.subr.mxu0 %v197
    %758 = vmatpush1.msra.mxu0 %v196
    %759 = vmatprep.subr.mxu0 %v201
    %760 = vmatpush1.msra.mxu0 %v200
    %761 = vmatprep.subr.mxu0 %v205
    %762 = vmatpush1.msra.mxu0 %v204
    %763 = vmatprep.subr.mxu0 %v209
    %764 = vmatpush1.msra.mxu0 %v208
    %765 = vmatprep.mubr.f32.mxu0 %v77
    %766 = vmatmul.mubr.f32.gmra.mrb[0].mxu0 %v76
    %v767 = vpop.f32.mrb[0].mxu0
    %v768 = vadd.f32 %v479, %v767
    %v769 = vpop.f32.mrb[0].mxu0
    %v770 = vadd.f32 %v483, %v769
    %771 = vdwg.mxu0
    %772 = vmatprep.subr.mxu0 %v213
    %773 = vmatpush1.msra.mxu0 %v212
    %774 = vmatprep.subr.mxu0 %v217
    %775 = vmatpush1.msra.mxu0 %v216
    %776 = vmatprep.subr.mxu0 %v221
    %777 = vmatpush1.msra.mxu0 %v220
    %778 = vmatprep.subr.mxu0 %v225
    %779 = vmatpush1.msra.mxu0 %v224
    %780 = vmatprep.subr.mxu0 %v229
    %781 = vmatpush1.msra.mxu0 %v228
    %782 = vmatprep.subr.mxu0 %v233
    %783 = vmatpush1.msra.mxu0 %v232
    %784 = vmatprep.subr.mxu0 %v237
    %785 = vmatpush1.msra.mxu0 %v236
    %786 = vmatprep.subr.mxu0 %v241
    %787 = vmatpush1.msra.mxu0 %v240
    %788 = vmatprep.subr.mxu0 %v245
    %789 = vmatpush1.msra.mxu0 %v244
    %790 = vmatprep.subr.mxu0 %v249
    %791 = vmatpush1.msra.mxu0 %v248
    %792 = vmatprep.subr.mxu0 %v253
    %793 = vmatpush1.msra.mxu0 %v252
    %794 = vmatprep.subr.mxu0 %v257
    %795 = vmatpush1.msra.mxu0 %v256
    %796 = vmatprep.subr.mxu0 %v261
    %797 = vmatpush1.msra.mxu0 %v260
    %798 = vmatprep.subr.mxu0 %v265
    %799 = vmatpush1.msra.mxu0 %v264
    %800 = vmatprep.subr.mxu0 %v269
    %801 = vmatpush1.msra.mxu0 %v268
    %802 = vmatprep.subr.mxu0 %v273
    %803 = vmatpush1.msra.mxu0 %v272
    %804 = vmatprep.subr.mxu0 %v277
    %805 = vmatpush1.msra.mxu0 %v276
    %806 = vmatprep.subr.mxu0 %v281
    %807 = vmatpush1.msra.mxu0 %v280
    %808 = vmatprep.subr.mxu0 %v285
    %809 = vmatpush1.msra.mxu0 %v284
    %810 = vmatprep.subr.mxu0 %v289
    %811 = vmatpush1.msra.mxu0 %v288
    %812 = vmatprep.subr.mxu0 %v293
    %813 = vmatpush1.msra.mxu0 %v292
    %814 = vmatprep.subr.mxu0 %v297
    %815 = vmatpush1.msra.mxu0 %v296
    %816 = vmatprep.subr.mxu0 %v301
    %817 = vmatpush1.msra.mxu0 %v300
    %818 = vmatprep.subr.mxu0 %v305
    %819 = vmatpush1.msra.mxu0 %v304
    %820 = vmatprep.subr.mxu0 %v309
    %821 = vmatpush1.msra.mxu0 %v308
    %822 = vmatprep.subr.mxu0 %v313
    %823 = vmatpush1.msra.mxu0 %v312
    %824 = vmatprep.subr.mxu0 %v317
    %825 = vmatpush1.msra.mxu0 %v316
    %826 = vmatprep.subr.mxu0 %v321
    %827 = vmatpush1.msra.mxu0 %v320
    %828 = vmatprep.subr.mxu0 %v325
    %829 = vmatpush1.msra.mxu0 %v324
    %830 = vmatprep.subr.mxu0 %v329
    %831 = vmatpush1.msra.mxu0 %v328
    %832 = vmatprep.subr.mxu0 %v333
    %833 = vmatpush1.msra.mxu0 %v332
    %834 = vmatprep.subr.mxu0 %v337
    %835 = vmatpush1.msra.mxu0 %v336
    %836 = vmatprep.mubr.f32.mxu0 %v79
    %837 = vmatmul.mubr.f32.gmra.mrb[0].mxu0 %v78
    %v838 = vpop.f32.mrb[0].mxu0
    %v839 = vadd.f32 %v768, %v838
    %v840 = vpop.f32.mrb[0].mxu0
    %v841 = vadd.f32 %v770, %v840
    %842 = vdwg.mxu0
    %843 = vmatprep.subr.mxu0 %v341
    %844 = vmatpush1.msra.mxu0 %v340
    %845 = vmatprep.subr.mxu0 %v345
    %846 = vmatpush1.msra.mxu0 %v344
    %847 = vmatprep.subr.mxu0 %v349
    %848 = vmatpush1.msra.mxu0 %v348
    %849 = vmatprep.subr.mxu0 %v353
    %850 = vmatpush1.msra.mxu0 %v352
    %851 = vmatprep.subr.mxu0 %v357
    %852 = vmatpush1.msra.mxu0 %v356
    %853 = vmatprep.subr.mxu0 %v361
    %854 = vmatpush1.msra.mxu0 %v360
    %855 = vmatprep.subr.mxu0 %v365
    %856 = vmatpush1.msra.mxu0 %v364
    %857 = vmatprep.subr.mxu0 %v369
    %858 = vmatpush1.msra.mxu0 %v368
    %859 = vmatprep.subr.mxu0 %v373
    %860 = vmatpush1.msra.mxu0 %v372
    %861 = vmatprep.subr.mxu0 %v377
    %862 = vmatpush1.msra.mxu0 %v376
    %863 = vmatprep.subr.mxu0 %v381
    %864 = vmatpush1.msra.mxu0 %v380
    %865 = vmatprep.subr.mxu0 %v385
    %866 = vmatpush1.msra.mxu0 %v384
    %867 = vmatprep.subr.mxu0 %v389
    %868 = vmatpush1.msra.mxu0 %v388
    %869 = vmatprep.subr.mxu0 %v393
    %870 = vmatpush1.msra.mxu0 %v392
    %871 = vmatprep.subr.mxu0 %v397
    %872 = vmatpush1.msra.mxu0 %v396
    %873 = vmatprep.subr.mxu0 %v401
    %874 = vmatpush1.msra.mxu0 %v400
    %875 = vmatprep.subr.mxu0 %v405
    %876 = vmatpush1.msra.mxu0 %v404
    %877 = vmatprep.subr.mxu0 %v409
    %878 = vmatpush1.msra.mxu0 %v408
    %879 = vmatprep.subr.mxu0 %v413
    %880 = vmatpush1.msra.mxu0 %v412
    %881 = vmatprep.subr.mxu0 %v417
    %882 = vmatpush1.msra.mxu0 %v416
    %883 = vmatprep.subr.mxu0 %v421
    %884 = vmatpush1.msra.mxu0 %v420
    %885 = vmatprep.subr.mxu0 %v425
    %886 = vmatpush1.msra.mxu0 %v424
    %887 = vmatprep.subr.mxu0 %v429
    %888 = vmatpush1.msra.mxu0 %v428
    %889 = vmatprep.subr.mxu0 %v433
    %890 = vmatpush1.msra.mxu0 %v432
    %891 = vmatprep.subr.mxu0 %v437
    %892 = vmatpush1.msra.mxu0 %v436
    %893 = vmatprep.subr.mxu0 %v441
    %894 = vmatpush1.msra.mxu0 %v440
    %895 = vmatprep.subr.mxu0 %v445
    %896 = vmatpush1.msra.mxu0 %v444
    %897 = vmatprep.subr.mxu0 %v449
    %898 = vmatpush1.msra.mxu0 %v448
    %899 = vmatprep.subr.mxu0 %v453
    %900 = vmatpush1.msra.mxu0 %v452
    %901 = vmatprep.subr.mxu0 %v457
    %902 = vmatpush1.msra.mxu0 %v456
    %903 = vmatprep.subr.mxu0 %v461
    %904 = vmatpush1.msra.mxu0 %v460
    %905 = vmatprep.subr.mxu0 %v465
    %906 = vmatpush1.msra.mxu0 %v464
    %907 = vmatprep.mubr.f32.mxu0 %v81
    %908 = vmatmul.mubr.f32.gmra.mrb[0].mxu0 %v80
    %v909 = vpop.f32.mrb[0].mxu0
    %v910 = vadd.f32 %v839, %v909
    %v911 = vpop.f32.mrb[0].mxu0
    %v912 = vadd.f32 %v841, %v911
    %913 = vdwg.mxu0
    %v914 = vtanh.pop %v697
    %v915 = vtanh.pop %v699
    %v916 = vxor.u32 %v699, 2147483648
    %v917 = vxor.u32 %v910, 2147483648
    %v918 = vmul.f32 %v916, 1.442695
    %v919 = vpow.pop %v918
    %v920 = vmul.f32 %v917, 1.442695
    %v921 = vpow.pop %v920
    %v922 = vadd.f32 %v919, 1.0
    %v923 = vadd.f32 %v921, 1.0
    %v924 = vrcp.pop %v922
    %v925 = vmul.f32 1.0, %v924
    %v926 = vrcp.pop %v923
    %v927 = vmul.f32 1.0, %v926
    %930 = vrot.lane.b32.xlu0 %v925, 64
    %v931 = vpop.permute.xlu0 %930
    %932 = vrot.lane.b32.xlu0 %v927, 64
    %v933 = vpop.permute.xlu0 %932
    %vm934 = vcmask 523264
    %v935 = vsel %vm934, %v931, %v933
    %v938 = vmul.f32 %v914, %v935
    %v939 = vmul.f32 %v915, %v933
    %v940 = vld [vmem:[#allocation12] sm:$0x3]
    %v942 = vlaneseq
    %v943 = vshrl.u32 %v942, 7
    %v944 = vsub.s32 0, %v943
    %v945 = vrot.slane %v940, %v944
    %v946 = vlaneseq
    %v947 = vshrl.u32 %v946, 7
    %v948 = vsub.s32 1, %v947
    %v949 = vrot.slane %v940, %v948
    %v952 = vmul.f32 %v938, %v945
    %v953 = vmul.f32 %v939, %v949
    %v954 = vsel %vm934, %v953, 0.0
    %v955 = vadd.f32 %v952, %v954
    %956 = vadd.xlane.f32.xlu0 %v955
    %v957 = vpop.xlane.xlu0 %956
    %s958 = smul.u32 0, 8
    %v959 = vlaneseq
    %v960 = vshrl.u32 %v959, 7
    %v961 = vstv %s958
    %v962 = vadd.s32 %v961, %v960
    %s963 = sld [smem:[#allocation4]]
    %v964 = vstv %s963
    %vm965 = vcmp.lt.s32.totalorder %v962, %v964
    %v966 = vsel %vm965, %v957, -1e+30
    %v967 = vsel %vm965, %v912, 0.0
    %968 = vxpose.xlu0.b32.start [1/16] %v966, 128
    %969 = vxpose.xlu0.b32.cont [2/16] 0.0, 128
    %970 = vxpose.xlu0.b32.cont [3/16] 0.0, 128
    %971 = vxpose.xlu0.b32.cont [4/16] 0.0, 128
    %972 = vxpose.xlu0.b32.cont [5/16] 0.0, 128
    %973 = vxpose.xlu0.b32.cont [6/16] 0.0, 128
    %974 = vxpose.xlu0.b32.cont [7/16] 0.0, 128
    %975 = vxpose.xlu0.b32.cont [8/16] 0.0, 128
    %976 = vxpose.xlu0.b32.cont [9/16] 0.0, 128
    %977 = vxpose.xlu0.b32.cont [10/16] 0.0, 128
    %978 = vxpose.xlu0.b32.cont [11/16] 0.0, 128
    %979 = vxpose.xlu0.b32.cont [12/16] 0.0, 128
    %980 = vxpose.xlu0.b32.cont [13/16] 0.0, 128
    %981 = vxpose.xlu0.b32.cont [14/16] 0.0, 128
    %982 = vxpose.xlu0.b32.cont [15/16] 0.0, 128
    %983 = vxpose.xlu0.b32.end [16/16] 0.0, 128
    %v984 = vpop.trf.xlu0
    %v985 = vpop.trf.xlu0
    %v986 = vpop.trf.xlu0
    %v987 = vpop.trf.xlu0
    %v988 = vpop.trf.xlu0
    %v989 = vpop.trf.xlu0
    %v990 = vpop.trf.xlu0
    %v991 = vpop.trf.xlu0
    %v992 = vpop.trf.xlu0
    %v993 = vpop.trf.xlu0
    %v994 = vpop.trf.xlu0
    %v995 = vpop.trf.xlu0
    %v996 = vpop.trf.xlu0
    %v997 = vpop.trf.xlu0
    %v998 = vpop.trf.xlu0
    %v999 = vpop.trf.xlu0
    %vm1000 = vcmask 57344
    %1001 = vst.msk [vmem:[#allocation15] sm:$0x1] %vm1000, %v984
    %1002 = vxpose.xlu0.b32.start [1/16] %v967, 128
    %1003 = vxpose.xlu0.b32.cont [2/16] 0.0, 128
    %1004 = vxpose.xlu0.b32.cont [3/16] 0.0, 128
    %1005 = vxpose.xlu0.b32.cont [4/16] 0.0, 128
    %1006 = vxpose.xlu0.b32.cont [5/16] 0.0, 128
    %1007 = vxpose.xlu0.b32.cont [6/16] 0.0, 128
    %1008 = vxpose.xlu0.b32.cont [7/16] 0.0, 128
    %1009 = vxpose.xlu0.b32.cont [8/16] 0.0, 128
    %1010 = vxpose.xlu0.b32.cont [9/16] 0.0, 128
    %1011 = vxpose.xlu0.b32.cont [10/16] 0.0, 128
    %1012 = vxpose.xlu0.b32.cont [11/16] 0.0, 128
    %1013 = vxpose.xlu0.b32.cont [12/16] 0.0, 128
    %1014 = vxpose.xlu0.b32.cont [13/16] 0.0, 128
    %1015 = vxpose.xlu0.b32.cont [14/16] 0.0, 128
    %1016 = vxpose.xlu0.b32.cont [15/16] 0.0, 128
    %1017 = vxpose.xlu0.b32.end [16/16] 0.0, 128
    %v1018 = vpop.trf.xlu0
    %v1019 = vpop.trf.xlu0
    %v1020 = vpop.trf.xlu0
    %v1021 = vpop.trf.xlu0
    %v1022 = vpop.trf.xlu0
    %v1023 = vpop.trf.xlu0
    %v1024 = vpop.trf.xlu0
    %v1025 = vpop.trf.xlu0
    %v1026 = vpop.trf.xlu0
    %v1027 = vpop.trf.xlu0
    %v1028 = vpop.trf.xlu0
    %v1029 = vpop.trf.xlu0
    %v1030 = vpop.trf.xlu0
    %v1031 = vpop.trf.xlu0
    %v1032 = vpop.trf.xlu0
    %v1033 = vpop.trf.xlu0
    %1034 = vst.msk [vmem:[#allocation2] sm:$0x1] %vm1000, %v1018
    %p1035 = scmp.eq.s32.totalorder 0, 0
    // Predicated region
    $region38: #{gated_attention_forward.1} parent=1 // pred_check
      %p1036 = pneg %p1035
    $region39: #{gated_attention_forward.1} parent=1 // pred_check_branch
      %1038 = sbr.rel (%p1036) target = $region41
    $region40: #{gated_attention_forward.1} parent=1 // pred_region
      %v1039 = vld [vmem:[#allocation15] sm:$0x1]
      %v1040 = vsel %vm1000, %v1039, -inf
      %1041 = vmax.xlane.f32.xlu0 %v1040
      %v1042 = vpop.xlane.xlu0 %1041
      %v1043 = vsub.f32 %v1039, %v1042
      %v1044 = vmul.f32 %v1043, 1.442695
      %v1045 = vpow.pop %v1044
      %v1046 = vsel %vm1000, %v1045, 0.0
      %1047 = vadd.xlane.f32.xlu0 %v1046
      %v1048 = vpop.xlane.xlu0 %1047
      %v1049 = vadd.f32 %v1048, 0.0
      %v1050 = vrcp.pop %v1049
      %v1051 = vmul.f32 %v1045, %v1050
      %1052 = vst.msk [vmem:[#allocation15] sm:$0x1] %vm1000, %v1051
      %v1053 = vld [vmem:[#allocation2] sm:$0x1]
      %v1054 = vmul.f32 %v1051, %v1053
      %v1055 = vsel %vm1000, %v1054, 0.0
      %1056 = vadd.xlane.f32.xlu0 %v1055
      %v1057 = vpop.xlane.xlu0 %1056
      %v1058 = vadd.f32 %v1057, 0.0
      %s1059 = sld [smem:[#allocation5]]
      %v1060 = vstv %s1059
      %v1061 = vadd.f32 %v1058, %v1060
      %vm1062 = vcmask 0
      %1063 = vst.msk [vmem:[#allocation14] sm:$0x1] %vm1062, %v1061
    $region41: #{gated_attention_forward.1} parent=1 // pred_fallthru
      _
    // Predicated region
    $region42: #{gated_attention_forward.1} parent=1 // pred_check
      _
    $region43: #{gated_attention_forward.1} parent=1 // pred_check_branch
      %1065 = sbr.rel (0) target = $region45
    $region44: #{gated_attention_forward.1} parent=1 // pred_region
      %s1067 = ssub.s32 16, 16
      %1068 = vsyncadd [#allocation8], %s1067
      %s1070 = sshll.u32 [#allocation14], 4
      %s1071 = int_to_ptr.vmem [resolvable:$true] %s1070
      %1073 = dma.vmem_to_hbm [thread:$0]  %s1071, 16, %s6, [#allocation8]
    $region45: #{gated_attention_forward.1} parent=1 // pred_fallthru
      _
    // Predicated region
    $region46: #{gated_attention_forward.1} parent=1 // pred_check
      _
    $region47: #{gated_attention_forward.1} parent=1 // pred_check_branch
      %1075 = sbr.rel (0) target = $region49
    $region48: #{gated_attention_forward.1} parent=1 // pred_region
      %s1077 = ssub.s32 16, 16
      %1078 = vsyncadd [#allocation16], %s1077
      %s1080 = sshll.u32 [#allocation15], 4
      %s1081 = int_to_ptr.vmem [resolvable:$true] %s1080
      %1083 = dma.vmem_to_hbm [thread:$0]  %s1081, 16, %s7, [#allocation16]
    $region49: #{gated_attention_forward.1} parent=1 // pred_fallthru
      _
    // Predicated region
    $region50: #{gated_attention_forward.1} parent=1 // pred_check
      _
    $region51: #{gated_attention_forward.1} parent=1 // pred_check_branch
      %1085 = sbr.rel (0) target = $region53
    $region52: #{gated_attention_forward.1} parent=1 // pred_region
      %1086 = dma.done [#allocation8], 16
    $region53: #{gated_attention_forward.1} parent=1 // pred_fallthru
      _
    // Predicated region
    $region54: #{gated_attention_forward.1} parent=1 // pred_check
      _
    $region55: #{gated_attention_forward.1} parent=1 // pred_check_branch
      %1088 = sbr.rel (0) target = $region57
    $region56: #{gated_attention_forward.1} parent=1 // pred_region
      %1089 = dma.done [#allocation16], 16
    $region57: #{gated_attention_forward.1} parent=1 // pred_fallthru
      _
    %1090 = vsyncpa [#allocation7], 1
    %1091 = vsyncpa [#allocation10], 1
    %1092 = vsyncpa [#allocation13], 1
    %1093 = vsyncpa [#allocation8], 1
    %1094 = vsyncpa [#allocation16], 1

</llo_original>
